<compile_context>
chip_gen: v7x
topology: tpu7x:2x2x1
jax: 0.10.0
libtpu: 0.0.40
codegen_flags: <defaults>
</compile_context>

<pallas_src>
import functools

import jax
import jax.numpy as jnp
from jax import lax
from jax.experimental import pallas as pl
from jax.experimental.pallas import tpu as pltpu

MIN_OVERLAP = 0.5


def _multibox_kernel(var0, var1, mine_tile,
                     t_os_ref, t_so_ref, prior_ref, loc_ref, conf_ref,
                     out_ref, negcol_ref):
    f32 = jnp.float32
    O = t_os_ref.shape[1]           # real number of objects
    O_pad = t_so_ref.shape[2]       # objects padded to a multiple of 128 (matmul K)
    P = prior_ref.shape[1]
    C = conf_ref.shape[1]
    pad_p = negcol_ref.shape[0]     # priors padded to a multiple of mine_tile

    t_os = t_os_ref[0]              # (O, 5)  [x1 y1 x2 y2 label] as columns
    t_so = t_so_ref[0]              # (8, O_pad) same data, one field per row (MXU LHS)
    t_x1, t_y1 = t_os[:, 0:1], t_os[:, 1:2]       # (O, 1)
    t_x2, t_y2 = t_os[:, 2:3], t_os[:, 3:4]

    pr = prior_ref[...]             # (4, P) cx cy w h as rows
    p_cx, p_cy = pr[0:1, :], pr[1:2, :]           # (1, P)
    p_w, p_h = pr[2:3, :], pr[3:4, :]
    p_x1 = p_cx - 0.5 * p_w
    p_y1 = p_cy - 0.5 * p_h
    p_x2 = p_cx + 0.5 * p_w
    p_y2 = p_cy + 0.5 * p_h

    # ---- Jaccard overlaps (O, P): objects on sublanes, priors on lanes ----
    ix1 = jnp.maximum(t_x1, p_x1)
    iy1 = jnp.maximum(t_y1, p_y1)
    ix2 = jnp.minimum(t_x2, p_x2)
    iy2 = jnp.minimum(t_y2, p_y2)
    inter = jnp.maximum(ix2 - ix1, 0.0) * jnp.maximum(iy2 - iy1, 0.0)
    area_t = (t_x2 - t_x1) * (t_y2 - t_y1)                 # (O, 1)
    area_p = (p_x2 - p_x1) * (p_y2 - p_y1)                 # (1, P)
    overlaps = inter / (area_t + area_p - inter)           # (O, P)

    o_iota = lax.broadcasted_iota(jnp.int32, (O, P), 0)
    p_iota = lax.broadcasted_iota(jnp.int32, (O, P), 1)

    # best object per prior (argmax over objects, first occurrence on ties)
    prior_overlaps = jnp.max(overlaps, axis=0, keepdims=True)                   # (1, P)
    prior_objects = jnp.min(jnp.where(overlaps == prior_overlaps, o_iota, O),
                            axis=0, keepdims=True)                              # (1, P)
    # best prior per object (argmax over priors)
    object_overlaps = jnp.max(overlaps, axis=1, keepdims=True)                  # (O, 1)
    object_priors = jnp.min(jnp.where(overlaps == object_overlaps, p_iota, P),
                            axis=1, keepdims=True)                              # (O, 1)

    # force each object's best prior to be assigned to that object with overlap 1
    forced = object_priors == p_iota                                            # (O, P)
    is_forced = jnp.max(forced.astype(jnp.int32), axis=0, keepdims=True) > 0    # (1, P)
    forced_obj = jnp.max(jnp.where(forced, o_iota, -1), axis=0, keepdims=True)  # (1, P)
    prior_objects = jnp.where(is_forced, forced_obj, prior_objects)
    prior_overlaps = jnp.where(is_forced, 1.0, prior_overlaps)

    # ---- matched-target gather as a single MXU matmul ----
    # one-hot selection matrix, rows >= O are automatically all-zero
    o_iota_pad = lax.broadcasted_iota(jnp.int32, (O_pad, P), 0)
    sel = (prior_objects == o_iota_pad).astype(f32)                             # (O_pad, P)
    gathered = jnp.dot(t_so, sel, preferred_element_type=f32)                   # (8, P)
    g_x1, g_y1 = gathered[0:1, :], gathered[1:2, :]
    g_x2, g_y2 = gathered[2:3, :], gathered[3:4, :]
    g_lab = gathered[4:5, :]

    label = jnp.where(prior_overlaps < MIN_OVERLAP, 0.0, g_lab)                 # (1, P)
    positive = (label != 0.0).astype(f32)

    # encode matched boxes xyxy -> gcxgcy; clamp w/h so degenerate / padded target
    # boxes can't emit -inf (those priors are masked by `positive` anyway)
    m_cx = 0.5 * (g_x1 + g_x2)
    m_cy = 0.5 * (g_y1 + g_y2)
    m_w = jnp.maximum(g_x2 - g_x1, 1e-10)
    m_h = jnp.maximum(g_y2 - g_y1, 1e-10)
    t_gcx = (m_cx - p_cx) / (p_w * var0)
    t_gcy = (m_cy - p_cy) / (p_h * var0)
    t_gw = jnp.log(m_w / p_w) / var1
    t_gh = jnp.log(m_h / p_h) / var1

    # ---- localization loss numerator ----
    plocs = loc_ref[0]                                                          # (4, P)
    diff = (jnp.abs(plocs[0:1, :] - t_gcx) + jnp.abs(plocs[1:2, :] - t_gcy) +
            jnp.abs(plocs[2:3, :] - t_gw) + jnp.abs(plocs[3:4, :] - t_gh))      # (1, P)
    loc_abs_sum = jnp.sum(diff * positive, axis=1, keepdims=True)               # (1, 1)
    n_pos = jnp.sum(positive, axis=1, keepdims=True)                            # (1, 1)

    # ---- per-prior cross-entropy (classes on sublanes, priors on lanes) ----
    logits = conf_ref[0]                                                        # (C, P)
    mmax = jnp.max(logits, axis=0, keepdims=True)                               # (1, P)
    lse = mmax + jnp.log(jnp.sum(jnp.exp(logits - mmax), axis=0, keepdims=True))
    c_iota = lax.broadcasted_iota(jnp.int32, (C, P), 0).astype(f32)
    picked = jnp.sum(logits * (c_iota == label).astype(f32), axis=0, keepdims=True)
    ce = lse - picked                                                           # (1, P)

    conf_pos_sum = jnp.sum(ce * positive, axis=1, keepdims=True)                # (1, 1)
    neg = ce * (1.0 - positive)                                                 # (1, P)

    # ---- hard-negative mining: sum of top-(3*n_pos) of `neg` via pairwise rank,
    #      tiled over the "other element" axis so the working set is O(mine_tile*P) ----
    neg_col = jnp.reshape(neg, (P, 1))
    if pad_p > P:   # pad with -1 (< any cross-entropy >= 0) so padding never ranks
        neg_col = jnp.concatenate(
            [neg_col, jnp.full((pad_p - P, 1), -1.0, f32)], axis=0)
    negcol_ref[...] = neg_col

    j_idx = lax.broadcasted_iota(jnp.int32, (1, P), 1)                          # (1, P)
    num_tiles = pad_p // mine_tile

    def mine_body(i, rank):
        start = pl.multiple_of(i * mine_tile, mine_tile)
        m_vals = negcol_ref[pl.ds(start, mine_tile), :]                         # (T, 1)
        m_idx = i * mine_tile + lax.broadcasted_iota(jnp.int32, (mine_tile, 1), 0)
        cmp = jnp.logical_or(m_vals > neg,
                             jnp.logical_and(m_vals == neg, m_idx < j_idx))     # (T, P)
        return rank + jnp.sum(cmp.astype(f32), axis=0, keepdims=True)

    rank = lax.fori_loop(0, num_tiles, mine_body, jnp.zeros((1, P), f32))       # (1, P)
    hard = (rank < 3.0 * n_pos).astype(f32)
    hard_neg_sum = jnp.sum(neg * hard, axis=1, keepdims=True)                   # (1, 1)

    # single coalesced store of the four per-image partial sums
    out_ref[0] = jnp.concatenate(
        [loc_abs_sum, n_pos, conf_pos_sum, hard_neg_sum], axis=1)               # (1, 4)


def multibox_loss(predict_locs, predict_confs, targets, priors, variances):
    """Pallas implementation of MultiBoxLoss.forward.

    predict_locs: (B, P, 4), predict_confs: (B, P, C),
    targets: (B, O, 5) [x1, y1, x2, y2, label], priors: (P, 4) cxcywh.
    """
    # TODO(synk): torch accepts a per-image variable number of target objects; here a
    #             fixed (padded) O per image is assumed.
    # TODO(synk): for very large P, P could additionally become a second grid axis with
    #             pl.when-init/finalize accumulators to further bound VMEM / overlap DMA.
    B, P, _ = predict_locs.shape
    C = predict_confs.shape[-1]
    O = targets.shape[1]
    var0, var1 = float(variances[0]), float(variances[1])
    f32 = jnp.float32

    targets = targets.astype(f32)
    targets_os = targets                                               # (B, O, 5)
    # matmul LHS: pad the contraction dim (objects) to a lane-aligned multiple of 128
    # and the field dim to 8 sublanes; padded entries are zero.
    o_pad = 128 * (-(-O // 128))
    targets_so = jnp.zeros((B, 8, o_pad), f32)
    targets_so = targets_so.at[:, :5, :O].set(jnp.transpose(targets, (0, 2, 1)))

    priors_t = jnp.transpose(priors.astype(f32), (1, 0))               # (4, P)
    locs_t = jnp.transpose(predict_locs.astype(f32), (0, 2, 1))        # (B, 4, P)
    confs_t = jnp.transpose(predict_confs.astype(f32), (0, 2, 1))      # (B, C, P)

    # hard-negative mining tile: keep each (mine_tile, P) f32 temporary <= ~4 MiB
    # (safe for v7x's smaller VMEM as well as v5e/v6e).
    mine_tile = 256
    while mine_tile > 8 and mine_tile * P * 4 > 4 * 1024 * 1024:
        mine_tile //= 2
    if P <= mine_tile:
        mine_tile = max(8, 8 * (-(-P // 8)))
    pad_p = mine_tile * (-(-P // mine_tile))

    kernel = functools.partial(_multibox_kernel, var0, var1, mine_tile)

    stats = pl.pallas_call(
        kernel,
        out_shape=jax.ShapeDtypeStruct((B, 1, 4), f32),
        grid_spec=pltpu.PrefetchScalarGridSpec(
            num_scalar_prefetch=0,
            grid=(B,),
            in_specs=[
                pl.BlockSpec((1, O, 5), lambda i: (i, 0, 0)),       # targets (O, 5)
                pl.BlockSpec((1, 8, o_pad), lambda i: (i, 0, 0)),   # targets^T (matmul LHS)
                pl.BlockSpec((4, P), lambda i: (0, 0)),             # priors (cxcywh rows)
                pl.BlockSpec((1, 4, P), lambda i: (i, 0, 0)),       # predicted locs
                pl.BlockSpec((1, C, P), lambda i: (i, 0, 0)),       # predicted logits
            ],
            out_specs=pl.BlockSpec((1, 1, 4), lambda i: (i, 0, 0)),
            scratch_shapes=[pltpu.VMEM((pad_p, 1), f32)],           # transposed `neg`
        ),
        compiler_params=pltpu.CompilerParams(
            dimension_semantics=("parallel",)),                     # batch -> both TCs on v7x
    )(targets_os, targets_so, priors_t, locs_t, confs_t)

    stats = stats[:, 0, :]                        # (B, 4)
    loc_sum = jnp.sum(stats[:, 0])
    n_pos_total = jnp.sum(stats[:, 1])
    conf_pos = jnp.sum(stats[:, 2])
    conf_hneg = jnp.sum(stats[:, 3])

    # NOTE: like the torch module, this divides by n_pos_total with no guard for the
    #       degenerate "no positive priors anywhere" case (kept semantics-identical).
    loc_loss = loc_sum / (4.0 * n_pos_total)      # nn.L1Loss (mean over n_pos x 4)
    conf_loss = (conf_hneg + conf_pos) / n_pos_total
    return conf_loss + loc_loss


# ---------------- plain-JAX reference (mirrors the torch code) ----------------
def _ref_loss(predict_locs, predict_confs, targets, priors, variances):
    var0, var1 = variances
    B, P, _ = predict_locs.shape
    p_xy, p_wh = priors[:, :2], priors[:, 2:]
    priors_xyxy = jnp.concatenate([p_xy - p_wh / 2, p_xy + p_wh / 2], axis=1)

    true_locs, true_confs = [], []
    for i in range(B):
        boxes, labels = targets[i, :, :4], targets[i, :, 4]
        O = boxes.shape[0]
        lo = jnp.maximum(boxes[:, None, :2], priors_xyxy[None, :, :2])
        hi = jnp.minimum(boxes[:, None, 2:], priors_xyxy[None, :, 2:])
        wh = jnp.clip(hi - lo, 0.0)
        inter = wh[..., 0] * wh[..., 1]
        area_b = ((boxes[:, 2] - boxes[:, 0]) * (boxes[:, 3] - boxes[:, 1]))[:, None]
        area_p = ((priors_xyxy[:, 2] - priors_xyxy[:, 0]) *
                  (priors_xyxy[:, 3] - priors_xyxy[:, 1]))[None, :]
        ov = inter / (area_b + area_p - inter)                    # (O, P)
        prior_overlaps = ov.max(axis=0)
        prior_objects = ov.argmax(axis=0)
        object_priors = ov.argmax(axis=1)
        prior_objects = prior_objects.at[object_priors].set(jnp.arange(O))
        prior_overlaps = prior_overlaps.at[object_priors].set(1.0)
        prior_labels = labels[prior_objects]
        prior_labels = jnp.where(prior_overlaps < MIN_OVERLAP, 0.0, prior_labels)
        matched = boxes[prior_objects]
        cxcy = jnp.stack([(matched[:, 0] + matched[:, 2]) / 2,
                          (matched[:, 1] + matched[:, 3]) / 2,
                          matched[:, 2] - matched[:, 0],
                          matched[:, 3] - matched[:, 1]], axis=1)
        tl = jnp.concatenate([(cxcy[:, :2] - priors[:, :2]) / (priors[:, 2:] * var0),
                              jnp.log(cxcy[:, 2:] / priors[:, 2:]) / var1], axis=1)
        true_locs.append(tl)
        true_confs.append(prior_labels)

    true_locs = jnp.stack(true_locs)
    true_confs = jnp.stack(true_confs)
    positive = (true_confs != 0).astype(jnp.float32)
    n_pos_i = positive.sum(axis=1)
    n_pos_total = n_pos_i.sum()

    loc_sum = (jnp.abs(predict_locs - true_locs).sum(axis=2) * positive).sum()
    loc_loss = loc_sum / (4.0 * n_pos_total)

    lse = jax.scipy.special.logsumexp(predict_confs, axis=2)
    picked = jnp.take_along_axis(predict_confs,
                                 true_confs.astype(jnp.int32)[..., None], axis=2)[..., 0]
    ce = lse - picked
    conf_pos = (ce * positive).sum()
    neg = ce * (1.0 - positive)
    neg_sorted = jnp.sort(neg, axis=1)[:, ::-1]
    mask = (jnp.arange(P)[None, :] < (3.0 * n_pos_i)[:, None]).astype(jnp.float32)
    conf_hneg = (neg_sorted * mask).sum()
    conf_loss = (conf_hneg + conf_pos) / n_pos_total
    return conf_loss + loc_loss


if __name__ == "__main__":
    key = jax.random.PRNGKey(0)
    B, P, C, O = 2, 256, 8, 3
    k1, k2, k3, k4, k5, k6, k7 = jax.random.split(key, 7)

    # deterministic synthetic "parameters": priors (cx, cy, w, h) and variances
    p_cxcy = jax.random.uniform(k1, (P, 2), minval=0.1, maxval=0.9)
    p_wh = jax.random.uniform(k2, (P, 2), minval=0.05, maxval=0.3)
    priors = jnp.concatenate([p_cxcy, p_wh], axis=1).astype(jnp.float32)
    variances = (0.1, 0.2)

    # targets: (B, O, 5) = xyxy box + class label in [1, C-1]
    t_c = jax.random.uniform(k3, (B, O, 2), minval=0.2, maxval=0.8)
    t_s = jax.random.uniform(k4, (B, O, 2), minval=0.08, maxval=0.3)
    boxes = jnp.concatenate([t_c - t_s / 2, t_c + t_s / 2], axis=-1)
    labels = jax.random.randint(k5, (B, O, 1), 1, C).astype(jnp.float32)
    targets = jnp.concatenate([boxes, labels], axis=-1).astype(jnp.float32)

    predict_locs = jax.random.normal(k6, (B, P, 4), dtype=jnp.float32)
    predict_confs = jax.random.normal(k7, (B, P, C), dtype=jnp.float32)

    loss = multibox_loss(predict_locs, predict_confs, targets, priors, variances)
    loss = jax.block_until_ready(loss)

    ref = _ref_loss(predict_locs, predict_confs, targets, priors, variances)
    assert jnp.isfinite(loss), loss
    assert abs(float(loss) - float(ref)) < 1e-3 * max(1.0, abs(float(ref))), (loss, ref)
    print("KERNEL_OK")
</pallas_src>

<mosaic_0001>
module attributes {stable_mosaic.version = 11 : i64} {
  func.func @_multibox_kernel(%arg0: i32, %arg1: memref<1x3x5xf32, #tpu.memory_space<vmem>>, %arg2: memref<1x8x128xf32, #tpu.memory_space<vmem>>, %arg3: memref<4x256xf32, #tpu.memory_space<vmem>>, %arg4: memref<1x4x256xf32, #tpu.memory_space<vmem>>, %arg5: memref<1x8x256xf32, #tpu.memory_space<vmem>>, %arg6: memref<1x1x4xf32, #tpu.memory_space<vmem>>, %arg7: memref<256x1xf32, #tpu.memory_space<vmem>>) attributes {dimension_semantics = [#tpu.dimension_semantics<parallel>], iteration_bounds = array<i64: 2>, scalar_prefetch = 0 : i64, scratch_operands = 1 : i64, tpu.core_type = #tpu.core_type<tc>, window_params = [{transform_indices = @transform_0, window_bounds = array<i64: 1, 3, 5>}, {transform_indices = @transform_1, window_bounds = array<i64: 1, 8, 128>}, {pipeline_mode = #tpu.pipeline_mode<synchronous>, transform_indices = @transform_2, window_bounds = array<i64: 4, 256>}, {transform_indices = @transform_3, window_bounds = array<i64: 1, 4, 256>}, {transform_indices = @transform_4, window_bounds = array<i64: 1, 8, 256>}, {transform_indices = @transform_5, window_bounds = array<i64: 1, 1, 4>}]} {
    %c0 = arith.constant 0 : index
    %c0_0 = arith.constant 0 : index
    %c0_1 = arith.constant 0 : index
    %0 = vector.load %arg1[%c0, %c0_0, %c0_1] : memref<1x3x5xf32, #tpu.memory_space<vmem>>, vector<1x3x5xf32>
    %1 = vector.shape_cast %0 : vector<1x3x5xf32> to vector<3x5xf32>
    %c0_2 = arith.constant 0 : index
    %c0_3 = arith.constant 0 : index
    %c0_4 = arith.constant 0 : index
    %2 = vector.load %arg2[%c0_2, %c0_3, %c0_4] : memref<1x8x128xf32, #tpu.memory_space<vmem>>, vector<1x8x128xf32>
    %3 = vector.shape_cast %2 : vector<1x8x128xf32> to vector<8x128xf32>
    %4 = vector.extract_strided_slice %1 {offsets = [0, 0], sizes = [3, 1], strides = [1, 1]} : vector<3x5xf32> to vector<3x1xf32>
    %5 = vector.extract_strided_slice %1 {offsets = [0, 1], sizes = [3, 1], strides = [1, 1]} : vector<3x5xf32> to vector<3x1xf32>
    %6 = vector.extract_strided_slice %1 {offsets = [0, 2], sizes = [3, 1], strides = [1, 1]} : vector<3x5xf32> to vector<3x1xf32>
    %7 = vector.extract_strided_slice %1 {offsets = [0, 3], sizes = [3, 1], strides = [1, 1]} : vector<3x5xf32> to vector<3x1xf32>
    %c0_5 = arith.constant 0 : index
    %c0_6 = arith.constant 0 : index
    %8 = vector.load %arg3[%c0_5, %c0_6] : memref<4x256xf32, #tpu.memory_space<vmem>>, vector<4x256xf32>
    %9 = vector.extract_strided_slice %8 {offsets = [0, 0], sizes = [1, 256], strides = [1, 1]} : vector<4x256xf32> to vector<1x256xf32>
    %10 = vector.extract_strided_slice %8 {offsets = [1, 0], sizes = [1, 256], strides = [1, 1]} : vector<4x256xf32> to vector<1x256xf32>
    %11 = vector.extract_strided_slice %8 {offsets = [2, 0], sizes = [1, 256], strides = [1, 1]} : vector<4x256xf32> to vector<1x256xf32>
    %12 = vector.extract_strided_slice %8 {offsets = [3, 0], sizes = [1, 256], strides = [1, 1]} : vector<4x256xf32> to vector<1x256xf32>
    %cst = arith.constant 5.000000e-01 : f32
    %13 = vector.broadcast %cst : f32 to vector<1x256xf32>
    %14 = arith.mulf %13, %11 : vector<1x256xf32>
    %15 = arith.subf %9, %14 : vector<1x256xf32>
    %cst_7 = arith.constant 5.000000e-01 : f32
    %16 = vector.broadcast %cst_7 : f32 to vector<1x256xf32>
    %17 = arith.mulf %16, %12 : vector<1x256xf32>
    %18 = arith.subf %10, %17 : vector<1x256xf32>
    %cst_8 = arith.constant 5.000000e-01 : f32
    %19 = vector.broadcast %cst_8 : f32 to vector<1x256xf32>
    %20 = arith.mulf %19, %11 : vector<1x256xf32>
    %21 = arith.addf %9, %20 : vector<1x256xf32>
    %cst_9 = arith.constant 5.000000e-01 : f32
    %22 = vector.broadcast %cst_9 : f32 to vector<1x256xf32>
    %23 = arith.mulf %22, %12 : vector<1x256xf32>
    %24 = arith.addf %10, %23 : vector<1x256xf32>
    %25 = vector.broadcast %4 : vector<3x1xf32> to vector<3x256xf32>
    %26 = vector.broadcast %15 : vector<1x256xf32> to vector<3x256xf32>
    %27 = arith.maximumf %25, %26 : vector<3x256xf32>
    %28 = vector.broadcast %5 : vector<3x1xf32> to vector<3x256xf32>
    %29 = vector.broadcast %18 : vector<1x256xf32> to vector<3x256xf32>
    %30 = arith.maximumf %28, %29 : vector<3x256xf32>
    %31 = vector.broadcast %6 : vector<3x1xf32> to vector<3x256xf32>
    %32 = vector.broadcast %21 : vector<1x256xf32> to vector<3x256xf32>
    %33 = arith.minimumf %31, %32 : vector<3x256xf32>
    %34 = vector.broadcast %7 : vector<3x1xf32> to vector<3x256xf32>
    %35 = vector.broadcast %24 : vector<1x256xf32> to vector<3x256xf32>
    %36 = arith.minimumf %34, %35 : vector<3x256xf32>
    %37 = arith.subf %33, %27 : vector<3x256xf32>
    %cst_10 = arith.constant 0.000000e+00 : f32
    %38 = vector.broadcast %cst_10 : f32 to vector<3x256xf32>
    %39 = arith.maximumf %37, %38 : vector<3x256xf32>
    %40 = arith.subf %36, %30 : vector<3x256xf32>
    %cst_11 = arith.constant 0.000000e+00 : f32
    %41 = vector.broadcast %cst_11 : f32 to vector<3x256xf32>
    %42 = arith.maximumf %40, %41 : vector<3x256xf32>
    %43 = arith.mulf %39, %42 : vector<3x256xf32>
    %44 = arith.subf %6, %4 : vector<3x1xf32>
    %45 = arith.subf %7, %5 : vector<3x1xf32>
    %46 = arith.mulf %44, %45 : vector<3x1xf32>
    %47 = arith.subf %21, %15 : vector<1x256xf32>
    %48 = arith.subf %24, %18 : vector<1x256xf32>
    %49 = arith.mulf %47, %48 : vector<1x256xf32>
    %50 = vector.broadcast %46 : vector<3x1xf32> to vector<3x256xf32>
    %51 = vector.broadcast %49 : vector<1x256xf32> to vector<3x256xf32>
    %52 = arith.addf %50, %51 : vector<3x256xf32>
    %53 = arith.subf %52, %43 : vector<3x256xf32>
    %54 = arith.divf %43, %53 : vector<3x256xf32>
    %55 = tpu.iota {dimensions = array<i32: 0>} : vector<3x256xi32>
    %56 = tpu.iota {dimensions = array<i32: 1>} : vector<3x256xi32>
    %cst_12 = arith.constant dense<0xFF800000> : vector<256xf32>
    %57 = vector.multi_reduction <maximumf>, %54, %cst_12 [0] : vector<3x256xf32> to vector<256xf32>
    %58 = vector.shape_cast %57 : vector<256xf32> to vector<1x256xf32>
    %59 = vector.broadcast %58 : vector<1x256xf32> to vector<3x256xf32>
    %60 = arith.cmpf oeq, %54, %59 : vector<3x256xf32>
    %c3_i32 = arith.constant 3 : i32
    %61 = vector.broadcast %c3_i32 : i32 to vector<3x256xi32>
    %62 = arith.select %60, %55, %61 : vector<3x256xi1>, vector<3x256xi32>
    %cst_13 = arith.constant dense<2147483647> : vector<256xi32>
    %63 = vector.multi_reduction <minsi>, %62, %cst_13 [0] : vector<3x256xi32> to vector<256xi32>
    %64 = vector.shape_cast %63 : vector<256xi32> to vector<1x256xi32>
    %cst_14 = arith.constant dense<0xFF800000> : vector<3xf32>
    %65 = vector.multi_reduction <maximumf>, %54, %cst_14 [1] : vector<3x256xf32> to vector<3xf32>
    %66 = vector.shape_cast %65 : vector<3xf32> to vector<3x1xf32>
    %67 = vector.broadcast %66 : vector<3x1xf32> to vector<3x256xf32>
    %68 = arith.cmpf oeq, %54, %67 : vector<3x256xf32>
    %c256_i32 = arith.constant 256 : i32
    %69 = vector.broadcast %c256_i32 : i32 to vector<3x256xi32>
    %70 = arith.select %68, %56, %69 : vector<3x256xi1>, vector<3x256xi32>
    %cst_15 = arith.constant dense<2147483647> : vector<3xi32>
    %71 = vector.multi_reduction <minsi>, %70, %cst_15 [1] : vector<3x256xi32> to vector<3xi32>
    %72 = vector.shape_cast %71 : vector<3xi32> to vector<3x1xi32>
    %73 = vector.broadcast %72 : vector<3x1xi32> to vector<3x256xi32>
    %74 = arith.cmpi eq, %73, %56 : vector<3x256xi32>
    %75 = arith.extui %74 : vector<3x256xi1> to vector<3x256xi32>
    %cst_16 = arith.constant dense<-2147483648> : vector<256xi32>
    %76 = vector.multi_reduction <maxsi>, %75, %cst_16 [0] : vector<3x256xi32> to vector<256xi32>
    %77 = vector.shape_cast %76 : vector<256xi32> to vector<1x256xi32>
    %c0_i32 = arith.constant 0 : i32
    %78 = vector.broadcast %c0_i32 : i32 to vector<1x256xi32>
    %79 = arith.cmpi sgt, %77, %78 : vector<1x256xi32>
    %c-1_i32 = arith.constant -1 : i32
    %80 = vector.broadcast %c-1_i32 : i32 to vector<3x256xi32>
    %81 = arith.select %74, %55, %80 : vector<3x256xi1>, vector<3x256xi32>
    %cst_17 = arith.constant dense<-2147483648> : vector<256xi32>
    %82 = vector.multi_reduction <maxsi>, %81, %cst_17 [0] : vector<3x256xi32> to vector<256xi32>
    %83 = vector.shape_cast %82 : vector<256xi32> to vector<1x256xi32>
    %84 = arith.select %79, %83, %64 : vector<1x256xi1>, vector<1x256xi32>
    %cst_18 = arith.constant 1.000000e+00 : f32
    %85 = vector.broadcast %cst_18 : f32 to vector<1x256xf32>
    %86 = arith.select %79, %85, %58 : vector<1x256xi1>, vector<1x256xf32>
    %87 = tpu.iota {dimensions = array<i32: 0>} : vector<128x256xi32>
    %88 = vector.broadcast %84 : vector<1x256xi32> to vector<128x256xi32>
    %89 = arith.cmpi eq, %88, %87 : vector<128x256xi32>
    %90 = arith.extui %89 : vector<128x256xi1> to vector<128x256xi32>
    %91 = arith.sitofp %90 : vector<128x256xi32> to vector<128x256xf32>
    %cst_19 = arith.constant dense<0.000000e+00> : vector<8x256xf32>
    %92 = tpu.matmul %3, %91, %cst_19 {dimension_numbers = #tpu.dot_dimension_numbers<[1], [0], [0], [1], [0, 0, 1, 1], [], []>} : vector<8x128xf32>, vector<128x256xf32>, vector<8x256xf32> -> vector<8x256xf32>
    %93 = vector.extract_strided_slice %92 {offsets = [0, 0], sizes = [1, 256], strides = [1, 1]} : vector<8x256xf32> to vector<1x256xf32>
    %94 = vector.extract_strided_slice %92 {offsets = [1, 0], sizes = [1, 256], strides = [1, 1]} : vector<8x256xf32> to vector<1x256xf32>
    %95 = vector.extract_strided_slice %92 {offsets = [2, 0], sizes = [1, 256], strides = [1, 1]} : vector<8x256xf32> to vector<1x256xf32>
    %96 = vector.extract_strided_slice %92 {offsets = [3, 0], sizes = [1, 256], strides = [1, 1]} : vector<8x256xf32> to vector<1x256xf32>
    %97 = vector.extract_strided_slice %92 {offsets = [4, 0], sizes = [1, 256], strides = [1, 1]} : vector<8x256xf32> to vector<1x256xf32>
    %cst_20 = arith.constant 5.000000e-01 : f32
    %98 = vector.broadcast %cst_20 : f32 to vector<1x256xf32>
    %99 = arith.cmpf olt, %86, %98 : vector<1x256xf32>
    %cst_21 = arith.constant 0.000000e+00 : f32
    %100 = vector.broadcast %cst_21 : f32 to vector<1x256xf32>
    %101 = arith.select %99, %100, %97 : vector<1x256xi1>, vector<1x256xf32>
    %cst_22 = arith.constant 0.000000e+00 : f32
    %102 = vector.broadcast %cst_22 : f32 to vector<1x256xf32>
    %103 = arith.cmpf one, %101, %102 : vector<1x256xf32>
    %104 = arith.extui %103 : vector<1x256xi1> to vector<1x256xi32>
    %105 = arith.sitofp %104 : vector<1x256xi32> to vector<1x256xf32>
    %106 = arith.addf %93, %95 : vector<1x256xf32>
    %cst_23 = arith.constant 5.000000e-01 : f32
    %107 = vector.broadcast %cst_23 : f32 to vector<1x256xf32>
    %108 = arith.mulf %107, %106 : vector<1x256xf32>
    %109 = arith.addf %94, %96 : vector<1x256xf32>
    %cst_24 = arith.constant 5.000000e-01 : f32
    %110 = vector.broadcast %cst_24 : f32 to vector<1x256xf32>
    %111 = arith.mulf %110, %109 : vector<1x256xf32>
    %112 = arith.subf %95, %93 : vector<1x256xf32>
    %cst_25 = arith.constant 1.000000e-10 : f32
    %113 = vector.broadcast %cst_25 : f32 to vector<1x256xf32>
    %114 = arith.maximumf %112, %113 : vector<1x256xf32>
    %115 = arith.subf %96, %94 : vector<1x256xf32>
    %cst_26 = arith.constant 1.000000e-10 : f32
    %116 = vector.broadcast %cst_26 : f32 to vector<1x256xf32>
    %117 = arith.maximumf %115, %116 : vector<1x256xf32>
    %118 = arith.subf %108, %9 : vector<1x256xf32>
    %cst_27 = arith.constant 1.000000e-01 : f32
    %119 = vector.broadcast %cst_27 : f32 to vector<1x256xf32>
    %120 = arith.mulf %11, %119 : vector<1x256xf32>
    %121 = arith.divf %118, %120 : vector<1x256xf32>
    %122 = arith.subf %111, %10 : vector<1x256xf32>
    %cst_28 = arith.constant 1.000000e-01 : f32
    %123 = vector.broadcast %cst_28 : f32 to vector<1x256xf32>
    %124 = arith.mulf %12, %123 : vector<1x256xf32>
    %125 = arith.divf %122, %124 : vector<1x256xf32>
    %126 = arith.divf %114, %11 : vector<1x256xf32>
    %127 = math.log %126 : vector<1x256xf32>
    %cst_29 = arith.constant 2.000000e-01 : f32
    %128 = vector.broadcast %cst_29 : f32 to vector<1x256xf32>
    %129 = arith.divf %127, %128 : vector<1x256xf32>
    %130 = arith.divf %117, %12 : vector<1x256xf32>
    %131 = math.log %130 : vector<1x256xf32>
    %cst_30 = arith.constant 2.000000e-01 : f32
    %132 = vector.broadcast %cst_30 : f32 to vector<1x256xf32>
    %133 = arith.divf %131, %132 : vector<1x256xf32>
    %c0_31 = arith.constant 0 : index
    %c0_32 = arith.constant 0 : index
    %c0_33 = arith.constant 0 : index
    %134 = vector.load %arg4[%c0_31, %c0_32, %c0_33] : memref<1x4x256xf32, #tpu.memory_space<vmem>>, vector<1x4x256xf32>
    %135 = vector.shape_cast %134 : vector<1x4x256xf32> to vector<4x256xf32>
    %136 = vector.extract_strided_slice %135 {offsets = [0, 0], sizes = [1, 256], strides = [1, 1]} : vector<4x256xf32> to vector<1x256xf32>
    %137 = arith.subf %136, %121 : vector<1x256xf32>
    %138 = math.absf %137 : vector<1x256xf32>
    %139 = vector.extract_strided_slice %135 {offsets = [1, 0], sizes = [1, 256], strides = [1, 1]} : vector<4x256xf32> to vector<1x256xf32>
    %140 = arith.subf %139, %125 : vector<1x256xf32>
    %141 = math.absf %140 : vector<1x256xf32>
    %142 = arith.addf %138, %141 : vector<1x256xf32>
    %143 = vector.extract_strided_slice %135 {offsets = [2, 0], sizes = [1, 256], strides = [1, 1]} : vector<4x256xf32> to vector<1x256xf32>
    %144 = arith.subf %143, %129 : vector<1x256xf32>
    %145 = math.absf %144 : vector<1x256xf32>
    %146 = arith.addf %142, %145 : vector<1x256xf32>
    %147 = vector.extract_strided_slice %135 {offsets = [3, 0], sizes = [1, 256], strides = [1, 1]} : vector<4x256xf32> to vector<1x256xf32>
    %148 = arith.subf %147, %133 : vector<1x256xf32>
    %149 = math.absf %148 : vector<1x256xf32>
    %150 = arith.addf %146, %149 : vector<1x256xf32>
    %151 = arith.mulf %150, %105 : vector<1x256xf32>
    %cst_34 = arith.constant dense<0.000000e+00> : vector<1xf32>
    %152 = vector.multi_reduction <add>, %151, %cst_34 [1] : vector<1x256xf32> to vector<1xf32>
    %153 = vector.shape_cast %152 : vector<1xf32> to vector<1x1xf32>
    %cst_35 = arith.constant dense<0.000000e+00> : vector<1xf32>
    %154 = vector.multi_reduction <add>, %105, %cst_35 [1] : vector<1x256xf32> to vector<1xf32>
    %155 = vector.shape_cast %154 : vector<1xf32> to vector<1x1xf32>
    %c0_36 = arith.constant 0 : index
    %c0_37 = arith.constant 0 : index
    %c0_38 = arith.constant 0 : index
    %156 = vector.load %arg5[%c0_36, %c0_37, %c0_38] : memref<1x8x256xf32, #tpu.memory_space<vmem>>, vector<1x8x256xf32>
    %157 = vector.shape_cast %156 : vector<1x8x256xf32> to vector<8x256xf32>
    %cst_39 = arith.constant dense<0xFF800000> : vector<256xf32>
    %158 = vector.multi_reduction <maximumf>, %157, %cst_39 [0] : vector<8x256xf32> to vector<256xf32>
    %159 = vector.shape_cast %158 : vector<256xf32> to vector<1x256xf32>
    %160 = vector.broadcast %159 : vector<1x256xf32> to vector<8x256xf32>
    %161 = arith.subf %157, %160 : vector<8x256xf32>
    %162 = math.exp %161 : vector<8x256xf32>
    %cst_40 = arith.constant dense<0.000000e+00> : vector<256xf32>
    %163 = vector.multi_reduction <add>, %162, %cst_40 [0] : vector<8x256xf32> to vector<256xf32>
    %164 = vector.shape_cast %163 : vector<256xf32> to vector<1x256xf32>
    %165 = math.log %164 : vector<1x256xf32>
    %166 = arith.addf %159, %165 : vector<1x256xf32>
    %167 = tpu.iota {dimensions = array<i32: 0>} : vector<8x256xi32>
    %168 = arith.sitofp %167 : vector<8x256xi32> to vector<8x256xf32>
    %169 = vector.broadcast %101 : vector<1x256xf32> to vector<8x256xf32>
    %170 = arith.cmpf oeq, %168, %169 : vector<8x256xf32>
    %171 = arith.extui %170 : vector<8x256xi1> to vector<8x256xi32>
    %172 = arith.sitofp %171 : vector<8x256xi32> to vector<8x256xf32>
    %173 = arith.mulf %157, %172 : vector<8x256xf32>
    %cst_41 = arith.constant dense<0.000000e+00> : vector<256xf32>
    %174 = vector.multi_reduction <add>, %173, %cst_41 [0] : vector<8x256xf32> to vector<256xf32>
    %175 = vector.shape_cast %174 : vector<256xf32> to vector<1x256xf32>
    %176 = arith.subf %166, %175 : vector<1x256xf32>
    %177 = arith.mulf %176, %105 : vector<1x256xf32>
    %cst_42 = arith.constant dense<0.000000e+00> : vector<1xf32>
    %178 = vector.multi_reduction <add>, %177, %cst_42 [1] : vector<1x256xf32> to vector<1xf32>
    %179 = vector.shape_cast %178 : vector<1xf32> to vector<1x1xf32>
    %cst_43 = arith.constant 1.000000e+00 : f32
    %180 = vector.broadcast %cst_43 : f32 to vector<1x256xf32>
    %181 = arith.subf %180, %105 : vector<1x256xf32>
    %182 = arith.mulf %176, %181 : vector<1x256xf32>
    %183 = vector.shape_cast %182 : vector<1x256xf32> to vector<256x1xf32>
    %c0_44 = arith.constant 0 : index
    %c0_45 = arith.constant 0 : index
    %184 = vector.load %arg7[%c0_44, %c0_45] : memref<256x1xf32, #tpu.memory_space<vmem>>, vector<256x1xf32>
    tpu.vector_store %arg7[%c0_44, %c0_45], %183 {strides = array<i32>} : memref<256x1xf32, #tpu.memory_space<vmem>>, vector<256x1xf32>,
    %185 = tpu.iota {dimensions = array<i32: 1>} : vector<1x256xi32>
    %cst_46 = arith.constant 0.000000e+00 : f32
    %186 = vector.broadcast %cst_46 : f32 to vector<1x256xf32>
    %c0_i32_47 = arith.constant 0 : i32
    %c256_i32_48 = arith.constant 256 : i32
    %187 = arith.muli %c0_i32_47, %c256_i32_48 : i32
    %188 = tpu.assume_multiple %187, 256 : i32
    %189 = arith.index_cast %188 : i32 to index
    %c0_49 = arith.constant 0 : index
    %190 = vector.load %arg7[%189, %c0_49] : memref<256x1xf32, #tpu.memory_space<vmem>>, vector<256x1xf32>
    %c256_i32_50 = arith.constant 256 : i32
    %191 = arith.muli %c0_i32_47, %c256_i32_50 : i32
    %192 = tpu.iota {dimensions = array<i32: 0>} : vector<256x1xi32>
    %193 = vector.broadcast %191 : i32 to vector<256x1xi32>
    %194 = arith.addi %193, %192 : vector<256x1xi32>
    %195 = vector.broadcast %190 : vector<256x1xf32> to vector<256x256xf32>
    %196 = vector.broadcast %182 : vector<1x256xf32> to vector<256x256xf32>
    %197 = arith.cmpf ogt, %195, %196 : vector<256x256xf32>
    %198 = vector.broadcast %190 : vector<256x1xf32> to vector<256x256xf32>
    %199 = vector.broadcast %182 : vector<1x256xf32> to vector<256x256xf32>
    %200 = arith.cmpf oeq, %198, %199 : vector<256x256xf32>
    %201 = vector.broadcast %194 : vector<256x1xi32> to vector<256x256xi32>
    %202 = vector.broadcast %185 : vector<1x256xi32> to vector<256x256xi32>
    %203 = arith.cmpi slt, %201, %202 : vector<256x256xi32>
    %204 = arith.andi %200, %203 : vector<256x256xi1>
    %205 = arith.ori %197, %204 : vector<256x256xi1>
    %206 = arith.extui %205 : vector<256x256xi1> to vector<256x256xi32>
    %207 = arith.sitofp %206 : vector<256x256xi32> to vector<256x256xf32>
    %cst_51 = arith.constant dense<0.000000e+00> : vector<256xf32>
    %208 = vector.multi_reduction <add>, %207, %cst_51 [0] : vector<256x256xf32> to vector<256xf32>
    %209 = vector.shape_cast %208 : vector<256xf32> to vector<1x256xf32>
    %210 = arith.addf %186, %209 : vector<1x256xf32>
    %c1_i32 = arith.constant 1 : i32
    %cst_52 = arith.constant 3.000000e+00 : f32
    %211 = vector.broadcast %cst_52 : f32 to vector<1x1xf32>
    %212 = arith.mulf %211, %155 : vector<1x1xf32>
    %213 = vector.broadcast %212 : vector<1x1xf32> to vector<1x256xf32>
    %214 = arith.cmpf olt, %210, %213 : vector<1x256xf32>
    %215 = arith.extui %214 : vector<1x256xi1> to vector<1x256xi32>
    %216 = arith.sitofp %215 : vector<1x256xi32> to vector<1x256xf32>
    %217 = arith.mulf %182, %216 : vector<1x256xf32>
    %cst_53 = arith.constant dense<0.000000e+00> : vector<1xf32>
    %218 = vector.multi_reduction <add>, %217, %cst_53 [1] : vector<1x256xf32> to vector<1xf32>
    %219 = vector.shape_cast %218 : vector<1xf32> to vector<1x1xf32>
    %220 = tpu.concatenate %153, %155, %179, %219 in 1 : vector<1x1xf32>, vector<1x1xf32>, vector<1x1xf32>, vector<1x1xf32> -> vector<1x4xf32>
    %c0_54 = arith.constant 0 : index
    %c0_55 = arith.constant 0 : index
    %c0_56 = arith.constant 0 : index
    %221 = vector.load %arg6[%c0_54, %c0_55, %c0_56] : memref<1x1x4xf32, #tpu.memory_space<vmem>>, vector<1x1x4xf32>
    %222 = vector.shape_cast %221 : vector<1x1x4xf32> to vector<1x4xf32>
    %223 = vector.shape_cast %220 : vector<1x4xf32> to vector<1x1x4xf32>
    tpu.vector_store %arg6[%c0_54, %c0_55, %c0_56], %223 {strides = array<i32>} : memref<1x1x4xf32, #tpu.memory_space<vmem>>, vector<1x1x4xf32>,
    return
  }
  func.func @transform_0(%arg0: i32) -> (i32, i32, i32) {
    %c0_i32 = arith.constant 0 : i32
    %c0_i32_0 = arith.constant 0 : i32
    %c0_i32_1 = arith.constant 0 : i32
    return %arg0, %c0_i32, %c0_i32_0 : i32, i32, i32
  }
  func.func @transform_1(%arg0: i32) -> (i32, i32, i32) {
    %c0_i32 = arith.constant 0 : i32
    %c0_i32_0 = arith.constant 0 : i32
    %c0_i32_1 = arith.constant 0 : i32
    return %arg0, %c0_i32, %c0_i32_0 : i32, i32, i32
  }
  func.func @transform_2(%arg0: i32) -> (i32, i32) {
    %c0_i32 = arith.constant 0 : i32
    %c0_i32_0 = arith.constant 0 : i32
    %c0_i32_1 = arith.constant 0 : i32
    return %c0_i32, %c0_i32_0 : i32, i32
  }
  func.func @transform_3(%arg0: i32) -> (i32, i32, i32) {
    %c0_i32 = arith.constant 0 : i32
    %c0_i32_0 = arith.constant 0 : i32
    %c0_i32_1 = arith.constant 0 : i32
    return %arg0, %c0_i32, %c0_i32_0 : i32, i32, i32
  }
  func.func @transform_4(%arg0: i32) -> (i32, i32, i32) {
    %c0_i32 = arith.constant 0 : i32
    %c0_i32_0 = arith.constant 0 : i32
    %c0_i32_1 = arith.constant 0 : i32
    return %arg0, %c0_i32, %c0_i32_0 : i32, i32, i32
  }
  func.func @transform_5(%arg0: i32) -> (i32, i32, i32) {
    %c0_i32 = arith.constant 0 : i32
    %c0_i32_0 = arith.constant 0 : i32
    %c0_i32_1 = arith.constant 0 : i32
    return %arg0, %c0_i32, %c0_i32_0 : i32, i32, i32
  }
}

</mosaic_0001>

<llo_original>
// kernel: tpu_custom_call.1
$region0: #{tpu_custom_call.1}
  #allocation0 [shape = 'u32[]', space=smem, size = 0x4, offset = 0x4, fixed_abs, tag = 'smem constant byte address 0x4 - core index']
  #allocation1 [shape = 'u32[144,128]{1,0:T(1,128)}', space=vmem, size = 0x12000, scoped, tag = 'internal scratch']
  #allocation2 [shape = 'f32[256,1]{1,0:T(8,128)}', space=vmem, size = 0x20000, scoped, tag = 'scratch operand']
  %s0 = inlined_call_operand.vmem [shape: f32[2,3,5], index: 0, kind: input, shape index: {}]
  %s1 = inlined_call_operand.vmem [shape: f32[2,8,128], index: 1, kind: input, shape index: {}]
  %s2 = inlined_call_operand.hbm [shape: f32[4,256], index: 2, kind: input, shape index: {}]
  %s3 = inlined_call_operand.hbm [shape: f32[2,4,256], index: 3, kind: input, shape index: {}]
  %s4 = inlined_call_operand.hbm [shape: f32[2,8,256], index: 4, kind: input, shape index: {}]
  %s5 = inlined_call_operand.hbm [shape: f32[2,1,4], index: 5, kind: output, shape index: {}]
  %s6 = sld [smem:[#allocation0]]
  $region65: #{tpu_custom_call.1} parent=0
    _
  %s8 = ssub.s32 1, %s6
  %s9 = scalar_select 0, %s8, %s6
  $region1: #{tpu_custom_call.1} parent=0
    #allocation3 [shape = 'u8[4096]{0}', space=vmem, size = 0x1000, scoped, tag = 'input window, operand 2, single buffered']
    #allocation4 [shape = 's32[2]{0}', space=sflag, size = 0x8, scoped, tag = 'scoped memory for tpu_custom_call.1']
    #allocation5 [shape = 's32[2]{0}', space=sflag, size = 0x8, scoped, tag = 'scoped memory for tpu_custom_call.1']
    #allocation6 [shape = 'u8[8192]{0}', space=vmem, size = 0x2000, scoped, tag = 'input window, operand 3']
    #allocation7 [shape = 's32[2]{0}', space=sflag, size = 0x8, scoped, tag = 'scoped memory for tpu_custom_call.1']
    #allocation8 [shape = 'u8[16384]{0}', space=vmem, size = 0x4000, scoped, tag = 'input window, operand 4']
    #allocation9 [shape = 'u8[1024]{0}', space=vmem, size = 0x400, scoped, tag = 'output window, operand 0']
    %10 = vsyncpa [#allocation4], 0
    %11 = vsyncpa [#allocation7], 0
    %s12 = scalar_lea.sflag [#allocation7], 1
    %13 = vsyncpa %s12, 0
    %14 = vsyncpa [#allocation5], 0
    %s15 = scalar_lea.sflag [#allocation5], 1
    %16 = vsyncpa %s15, 0
    loop: start=0, step=1, limit=4
    $region2: #{tpu_custom_call.1} parent=1 // loop_pre_header
      _
    $region3: #{tpu_custom_call.1} parent=1 // loop_header
      %s18 = sphi 0, %s22
      %p19 = scmp.ge.s32.totalorder %s18, 4
      %s28 = sphi 0, %s30
      %s31 = sphi 0, %s28
      %s32 = sphi 0, %s31
      %s48 = sphi 0, %s32
      %s54 = sphi 0, %s56
      %s57 = sphi 0, %s54
      %s58 = sphi 0, %s57
      %s74 = sphi 0, %s58
      %s78 = sphi 0, %s78
      %s80 = sphi 0, %s78
      %s81 = sphi 0, %s80
      %s95 = sphi 0, %s81
      %s101 = sphi 0, %s103
      %s104 = sphi 0, %s101
      %s105 = sphi 0, %s104
      %s121 = sphi 0, %s105
      %s127 = sphi 0, %s129
      %s130 = sphi 0, %s127
      %s131 = sphi 0, %s130
      %s147 = sphi 0, %s131
      %s153 = sphi 0, %s155
      %s156 = sphi 0, %s153
      %s157 = sphi 0, %s156
      %s173 = sphi 0, %s157
    $region4: #{tpu_custom_call.1} parent=1 // loop_header_branch
      %21 = sbr.rel (%p19) target = $region8
    $region5: #{tpu_custom_call.1} parent=1 // loop_body
      %s23 = ssub.s32 %s18, 1
      %s24 = ssub.s32 %s18, 2
      %s25 = sadd.s32 %s18, 1
      %s26 = ssub.s32 %s18, %s25
      %p27 = scmp.eq.s32.totalorder %s26, 0
      %s29 = sadd.s32 %s28, 1
      %s30 = scalar_select %p27, %s28, %s29
      %p33 = pneg %p27
      %p34 = scmp.eq.s32.totalorder %s18, 1
      %p35 = por %p33, %p34
      %p36 = scmp.ne.s32.totalorder %s28, %s31
      %p37 = scmp.eq.s32.totalorder %s18, 0
      %p38 = por %p36, %p37
      %p39 = scmp.ne.s32.totalorder %s28, %s31
      %p40 = scmp.eq.s32.totalorder %s23, 1
      %p41 = por %p39, %p40
      %p42 = scmp.ne.s32.totalorder %s31, %s32
      %p43 = scmp.eq.s32.totalorder %s23, 0
      %p44 = por %p42, %p43
      %p45 = scmp.ne.s32.totalorder %s31, %s32
      %p46 = scmp.eq.s32.totalorder %s24, 1
      %p47 = por %p45, %p46
      %p49 = scmp.ne.s32.totalorder %s32, %s48
      %p50 = scmp.eq.s32.totalorder %s24, 0
      %p51 = por %p49, %p50
      %s52 = ssub.s32 %s18, %s25
      %p53 = scmp.eq.s32.totalorder %s52, 0
      %s55 = sadd.s32 %s54, 1
      %s56 = scalar_select %p53, %s54, %s55
      %p59 = pneg %p53
      %p60 = scmp.eq.s32.totalorder %s18, 1
      %p61 = por %p59, %p60
      %p62 = scmp.ne.s32.totalorder %s54, %s57
      %p63 = scmp.eq.s32.totalorder %s18, 0
      %p64 = por %p62, %p63
      %p65 = scmp.ne.s32.totalorder %s54, %s57
      %p66 = scmp.eq.s32.totalorder %s23, 1
      %p67 = por %p65, %p66
      %p68 = scmp.ne.s32.totalorder %s57, %s58
      %p69 = scmp.eq.s32.totalorder %s23, 0
      %p70 = por %p68, %p69
      %p71 = scmp.ne.s32.totalorder %s57, %s58
      %p72 = scmp.eq.s32.totalorder %s24, 1
      %p73 = por %p71, %p72
      %p75 = scmp.ne.s32.totalorder %s58, %s74
      %p76 = scmp.eq.s32.totalorder %s24, 0
      %p77 = por %p75, %p76
      %s79 = sadd.s32 %s78, 1
      %p82 = scmp.eq.s32.totalorder %s18, 1
      %p83 = scmp.ne.s32.totalorder %s78, %s80
      %p84 = scmp.eq.s32.totalorder %s18, 0
      %p85 = por %p83, %p84
      %p86 = scmp.ne.s32.totalorder %s78, %s80
      %p87 = scmp.eq.s32.totalorder %s23, 1
      %p88 = por %p86, %p87
      %p89 = scmp.ne.s32.totalorder %s80, %s81
      %p90 = scmp.eq.s32.totalorder %s23, 0
      %p91 = por %p89, %p90
      %p92 = scmp.ne.s32.totalorder %s80, %s81
      %p93 = scmp.eq.s32.totalorder %s24, 1
      %p94 = por %p92, %p93
      %p96 = scmp.ne.s32.totalorder %s81, %s95
      %p97 = scmp.eq.s32.totalorder %s24, 0
      %p98 = por %p96, %p97
      %s99 = ssub.s32 %s18, %s25
      %p100 = scmp.eq.s32.totalorder %s99, 0
      %s102 = sadd.s32 %s101, 1
      %s103 = scalar_select %p100, %s101, %s102
      %p106 = pneg %p100
      %p107 = scmp.eq.s32.totalorder %s18, 1
      %p108 = por %p106, %p107
      %p109 = scmp.ne.s32.totalorder %s101, %s104
      %p110 = scmp.eq.s32.totalorder %s18, 0
      %p111 = por %p109, %p110
      %p112 = scmp.ne.s32.totalorder %s101, %s104
      %p113 = scmp.eq.s32.totalorder %s23, 1
      %p114 = por %p112, %p113
      %p115 = scmp.ne.s32.totalorder %s104, %s105
      %p116 = scmp.eq.s32.totalorder %s23, 0
      %p117 = por %p115, %p116
      %p118 = scmp.ne.s32.totalorder %s104, %s105
      %p119 = scmp.eq.s32.totalorder %s24, 1
      %p120 = por %p118, %p119
      %p122 = scmp.ne.s32.totalorder %s105, %s121
      %p123 = scmp.eq.s32.totalorder %s24, 0
      %p124 = por %p122, %p123
      %s125 = ssub.s32 %s18, %s25
      %p126 = scmp.eq.s32.totalorder %s125, 0
      %s128 = sadd.s32 %s127, 1
      %s129 = scalar_select %p126, %s127, %s128
      %p132 = pneg %p126
      %p133 = scmp.eq.s32.totalorder %s18, 1
      %p134 = por %p132, %p133
      %p135 = scmp.ne.s32.totalorder %s127, %s130
      %p136 = scmp.eq.s32.totalorder %s18, 0
      %p137 = por %p135, %p136
      %p138 = scmp.ne.s32.totalorder %s127, %s130
      %p139 = scmp.eq.s32.totalorder %s23, 1
      %p140 = por %p138, %p139
      %p141 = scmp.ne.s32.totalorder %s130, %s131
      %p142 = scmp.eq.s32.totalorder %s23, 0
      %p143 = por %p141, %p142
      %p144 = scmp.ne.s32.totalorder %s130, %s131
      %p145 = scmp.eq.s32.totalorder %s24, 1
      %p146 = por %p144, %p145
      %p148 = scmp.ne.s32.totalorder %s131, %s147
      %p149 = scmp.eq.s32.totalorder %s24, 0
      %p150 = por %p148, %p149
      %s151 = ssub.s32 %s18, %s25
      %p152 = scmp.eq.s32.totalorder %s151, 0
      %s154 = sadd.s32 %s153, 1
      %s155 = scalar_select %p152, %s153, %s154
      %p158 = pneg %p152
      %p159 = scmp.eq.s32.totalorder %s18, 1
      %p160 = por %p158, %p159
      %p161 = scmp.ne.s32.totalorder %s153, %s156
      %p162 = scmp.eq.s32.totalorder %s18, 0
      %p163 = por %p161, %p162
      %p164 = scmp.ne.s32.totalorder %s153, %s156
      %p165 = scmp.eq.s32.totalorder %s23, 1
      %p166 = por %p164, %p165
      %p167 = scmp.ne.s32.totalorder %s156, %s157
      %p168 = scmp.eq.s32.totalorder %s23, 0
      %p169 = por %p167, %p168
      %p170 = scmp.ne.s32.totalorder %s156, %s157
      %p171 = scmp.eq.s32.totalorder %s24, 1
      %p172 = por %p170, %p171
      %p174 = scmp.ne.s32.totalorder %s157, %s173
      %p175 = scmp.eq.s32.totalorder %s24, 0
      %p176 = por %p174, %p175
      %p177 = scmp.le.s32.totalorder 1, %s18
      %p178 = scmp.lt.s32.totalorder %s18, 3
      %p179 = pnand %p177, %p178
      %p180 = pneg %p179
      // Predicated region
      $region9: #{tpu_custom_call.1} parent=5 // pred_check
        _
      $region10: #{tpu_custom_call.1} parent=5 // pred_check_branch
        %182 = sbr.rel (%p179) target = $region12
      $region11: #{tpu_custom_call.1} parent=5 // pred_region
        %s183 = ssub.s32 %s18, 1
        // Predicated region
        $region13: #{tpu_custom_call.1} parent=11 // pred_check
          %p184 = pneg %p91
        $region14: #{tpu_custom_call.1} parent=11 // pred_check_branch
          %186 = sbr.rel (%p184) target = $region16
        $region15: #{tpu_custom_call.1} parent=11 // pred_region
          %s188 = ssub.s32 128, 128
          %189 = vsyncadd [#allocation4], %s188
          %s191 = sshll.u32 [#allocation3], 4
          %s192 = int_to_ptr.vmem [resolvable:$true] %s191
          %194 = dma.hbm_to_vmem [thread:$0]  %s2, 128, %s192, [#allocation4]
        $region16: #{tpu_custom_call.1} parent=11 // pred_fallthru
          _
      $region12: #{tpu_custom_call.1} parent=5 // pred_fallthru
        _
      %p195 = scmp.lt.s32.totalorder %s18, 2
      // Predicated region
      $region17: #{tpu_custom_call.1} parent=5 // pred_check
        %p196 = pneg %p195
      $region18: #{tpu_custom_call.1} parent=5 // pred_check_branch
        %198 = sbr.rel (%p196) target = $region20
      $region19: #{tpu_custom_call.1} parent=5 // pred_region
        // Predicated region
        $region21: #{tpu_custom_call.1} parent=19 // pred_check
          %p199 = pneg %p38
        $region22: #{tpu_custom_call.1} parent=19 // pred_check_branch
          %201 = sbr.rel (%p199) target = $region24
        $region23: #{tpu_custom_call.1} parent=19 // pred_region
          %p202 = scmp.lt.s32.totalorder %s18, 1
          %s203 = scalar_select %p202, %s18, 1
          %s204 = smul.addr %s203, 4
          %s205 = scalar_lea.vmem %s0, %s204
        $region24: #{tpu_custom_call.1} parent=19 // pred_fallthru
          _
        // Predicated region
        $region25: #{tpu_custom_call.1} parent=19 // pred_check
          %p206 = pneg %p64
        $region26: #{tpu_custom_call.1} parent=19 // pred_check_branch
          %208 = sbr.rel (%p206) target = $region28
        $region27: #{tpu_custom_call.1} parent=19 // pred_region
          %p209 = scmp.lt.s32.totalorder %s18, 1
          %s210 = scalar_select %p209, %s18, 1
          %s211 = smul.addr %s210, 8
          %s212 = scalar_lea.vmem %s1, %s211
        $region28: #{tpu_custom_call.1} parent=19 // pred_fallthru
          _
        // Predicated region
        $region29: #{tpu_custom_call.1} parent=19 // pred_check
          %p213 = pneg %p111
        $region30: #{tpu_custom_call.1} parent=19 // pred_check_branch
          %215 = sbr.rel (%p213) target = $region32
        $region31: #{tpu_custom_call.1} parent=19 // pred_region
          %s216 = sand.u32 %s18, 1
          %s217 = scalar_lea.sflag [#allocation7], %s216
          %s218 = sand.u32 %s101, 1
          %s219 = smul.addr %s218, 8
          %s220 = scalar_lea.vmem [#allocation6], %s219
          %s222 = ssub.s32 128, 128
          %223 = vsyncadd %s217, %s222
          %s224 = smul.addr %s18, 2
          %s225 = smul.addr %s224, 64
          %s226 = scalar_lea.hbm %s3, %s225
          %s228 = sshll.u32 %s220, 4
          %s229 = int_to_ptr.vmem [resolvable:$true] %s228
          %231 = dma.hbm_to_vmem [thread:$0]  %s226, 128, %s229, %s217
        $region32: #{tpu_custom_call.1} parent=19 // pred_fallthru
          _
        // Predicated region
        $region33: #{tpu_custom_call.1} parent=19 // pred_check
          %p232 = pneg %p137
        $region34: #{tpu_custom_call.1} parent=19 // pred_check_branch
          %234 = sbr.rel (%p232) target = $region36
        $region35: #{tpu_custom_call.1} parent=19 // pred_region
          %s235 = sand.u32 %s18, 1
          %s236 = scalar_lea.sflag [#allocation7], %s235
          %s237 = sand.u32 %s127, 1
          %s238 = smul.addr %s237, 16
          %s239 = scalar_lea.vmem [#allocation8], %s238
          %s241 = ssub.s32 256, 256
          %242 = vsyncadd %s236, %s241
          %s243 = smul.addr %s18, 2
          %s244 = smul.addr %s243, 128
          %s245 = scalar_lea.hbm %s4, %s244
          %s247 = sshll.u32 %s239, 4
          %s248 = int_to_ptr.vmem [resolvable:$true] %s247
          %250 = dma.hbm_to_vmem [thread:$0]  %s245, 256, %s248, %s236
        $region36: #{tpu_custom_call.1} parent=19 // pred_fallthru
          _
      $region20: #{tpu_custom_call.1} parent=5 // pred_fallthru
        _
      %p251 = scmp.le.s32.totalorder 1, %s18
      %p252 = scmp.lt.s32.totalorder %s18, 3
      %p253 = pnand %p251, %p252
      %p254 = pneg %p253
      // Predicated region
      $region37: #{tpu_custom_call.1} parent=5 // pred_check
        _
      $region38: #{tpu_custom_call.1} parent=5 // pred_check_branch
        %256 = sbr.rel (%p253) target = $region40
      $region39: #{tpu_custom_call.1} parent=5 // pred_region
        %s257 = ssub.s32 %s18, 1
        // Predicated region
        $region41: #{tpu_custom_call.1} parent=39 // pred_check
          %p258 = pneg %p91
        $region42: #{tpu_custom_call.1} parent=39 // pred_check_branch
          %260 = sbr.rel (%p258) target = $region44
        $region43: #{tpu_custom_call.1} parent=39 // pred_region
          %261 = dma.done [#allocation4], 128
        $region44: #{tpu_custom_call.1} parent=39 // pred_fallthru
          _
        %s262 = sand.u32 %s23, 1
        %s263 = scalar_lea.sflag [#allocation7], %s262
        %s264 = sand.u32 %s104, 1
        %s265 = smul.addr %s264, 8
        %s266 = scalar_lea.vmem [#allocation6], %s265
        // Predicated region
        $region45: #{tpu_custom_call.1} parent=39 // pred_check
          %p267 = pneg %p117
        $region46: #{tpu_custom_call.1} parent=39 // pred_check_branch
          %269 = sbr.rel (%p267) target = $region48
        $region47: #{tpu_custom_call.1} parent=39 // pred_region
          %270 = dma.done %s263, 128
        $region48: #{tpu_custom_call.1} parent=39 // pred_fallthru
          _
        %s271 = sand.u32 %s23, 1
        %s272 = scalar_lea.sflag [#allocation7], %s271
        %s273 = sand.u32 %s130, 1
        %s274 = smul.addr %s273, 16
        %s275 = scalar_lea.vmem [#allocation8], %s274
        // Predicated region
        $region49: #{tpu_custom_call.1} parent=39 // pred_check
          %p276 = pneg %p143
        $region50: #{tpu_custom_call.1} parent=39 // pred_check_branch
          %278 = sbr.rel (%p276) target = $region52
        $region51: #{tpu_custom_call.1} parent=39 // pred_region
          %279 = dma.done %s272, 256
        $region52: #{tpu_custom_call.1} parent=39 // pred_fallthru
          _
        %p280 = scmp.lt.s32.totalorder %s23, 1
        %s281 = scalar_select %p280, %s23, 1
        %s282 = smul.addr %s281, 4
        %s283 = scalar_lea.vmem %s0, %s282
        %p284 = pneg %p44
        %p285 = pneg %p41
        %p286 = scmp.lt.s32.totalorder %s23, 1
        %s287 = scalar_select %p286, %s23, 1
        %s288 = smul.addr %s287, 8
        %s289 = scalar_lea.vmem %s1, %s288
        %p290 = pneg %p70
        %p291 = pneg %p67
        %p292 = pneg %p91
        %p293 = pneg %p88
        %s294 = sand.u32 %s23, 1
        %s295 = scalar_lea.sflag [#allocation7], %s294
        %s296 = sand.u32 %s104, 1
        %s297 = smul.addr %s296, 8
        %s298 = scalar_lea.vmem [#allocation6], %s297
        %p299 = pneg %p117
        %p300 = pneg %p114
        %s301 = sand.u32 %s23, 1
        %s302 = scalar_lea.sflag [#allocation7], %s301
        %s303 = sand.u32 %s130, 1
        %s304 = smul.addr %s303, 16
        %s305 = scalar_lea.vmem [#allocation8], %s304
        %p306 = pneg %p143
        %p307 = pneg %p140
        %p308 = pneg %p169
        %p309 = pneg %p166
        %s310 = sand.u32 %s156, 1
        %s311 = scalar_lea.sflag [#allocation5], %s310
        %s312 = sand.u32 %s156, 1
        %s313 = scalar_lea.vmem [#allocation9], %s312
        %p314 = scmp.lt.s32.totalorder %s23, 1
        %s315 = scalar_select %p314, %s23, 1
        %s316 = smul.addr %s315, 4
        %s317 = scalar_lea.vmem %s0, %s316
        %p318 = scmp.lt.s32.totalorder %s23, 1
        %s319 = scalar_select %p318, %s23, 1
        %s320 = smul.addr %s319, 8
        %s321 = scalar_lea.vmem %s1, %s320
        %v322 = vld [vmem:[%s317] sm:$0x7]
        %v323 = vld [vmem:[%s321] sm:$0xff]
        %v324 = vld [vmem:[#allocation3] sm:$0xff]
        %v325 = vmul.f32 %v324, 0.5
        %v327 = vrot.slane %v325, 6
        %v328 = vrot.slane %v327, 4
        %v330 = vsub.f32 %v324, %v328
        %v331 = vadd.f32 %v324, %v328
        %333 = vset.pattern.permute.xlu0 0
        %334 = vperm.xlu0 %333, %v322
        %v335 = vpop.permute.xlu0 %334
        %v338 = vlaneseq
        %v339 = vshrl.u32 %v338, 7
        %v340 = vsub.s32 0, %v339
        %v341 = vrot.slane %v330, %v340
        %v342 = vlaneseq
        %v343 = vshrl.u32 %v342, 7
        %v344 = vsub.s32 4, %v343
        %v345 = vrot.slane %v330, %v344
        %v348 = vlaneseq
        %v349 = vshrl.u32 %v348, 7
        %v350 = vsub.s32 0, %v349
        %v351 = vrot.slane %v341, %v350
        %v352 = vlaneseq
        %v353 = vshrl.u32 %v352, 7
        %v354 = vsub.s32 0, %v353
        %v355 = vrot.slane %v345, %v354
        %v356 = vmax.f32 %v335, %v351
        %v357 = vmax.f32 %v335, %v355
        %358 = vset.pattern.permute.xlu0 1
        %359 = vperm.xlu0 %358, %v322
        %v360 = vpop.permute.xlu0 %359
        %v362 = vlaneseq
        %v363 = vshrl.u32 %v362, 7
        %v364 = vsub.s32 1, %v363
        %v365 = vrot.slane %v330, %v364
        %v366 = vlaneseq
        %v367 = vshrl.u32 %v366, 7
        %v368 = vsub.s32 5, %v367
        %v369 = vrot.slane %v330, %v368
        %v372 = vlaneseq
        %v373 = vshrl.u32 %v372, 7
        %v374 = vsub.s32 1, %v373
        %v375 = vrot.slane %v365, %v374
        %v376 = vlaneseq
        %v377 = vshrl.u32 %v376, 7
        %v378 = vsub.s32 1, %v377
        %v379 = vrot.slane %v369, %v378
        %v380 = vmax.f32 %v360, %v375
        %v381 = vmax.f32 %v360, %v379
        %382 = vset.pattern.permute.xlu0 2
        %383 = vperm.xlu0 %382, %v322
        %v384 = vpop.permute.xlu0 %383
        %v387 = vlaneseq
        %v388 = vshrl.u32 %v387, 7
        %v389 = vsub.s32 0, %v388
        %v390 = vrot.slane %v331, %v389
        %v391 = vlaneseq
        %v392 = vshrl.u32 %v391, 7
        %v393 = vsub.s32 4, %v392
        %v394 = vrot.slane %v331, %v393
        %v397 = vlaneseq
        %v398 = vshrl.u32 %v397, 7
        %v399 = vsub.s32 0, %v398
        %v400 = vrot.slane %v390, %v399
        %v401 = vlaneseq
        %v402 = vshrl.u32 %v401, 7
        %v403 = vsub.s32 0, %v402
        %v404 = vrot.slane %v394, %v403
        %v405 = vmin.f32 %v384, %v400
        %v406 = vmin.f32 %v384, %v404
        %407 = vset.pattern.permute.xlu0 3
        %408 = vperm.xlu0 %407, %v322
        %v409 = vpop.permute.xlu0 %408
        %v411 = vlaneseq
        %v412 = vshrl.u32 %v411, 7
        %v413 = vsub.s32 1, %v412
        %v414 = vrot.slane %v331, %v413
        %v415 = vlaneseq
        %v416 = vshrl.u32 %v415, 7
        %v417 = vsub.s32 5, %v416
        %v418 = vrot.slane %v331, %v417
        %v421 = vlaneseq
        %v422 = vshrl.u32 %v421, 7
        %v423 = vsub.s32 1, %v422
        %v424 = vrot.slane %v414, %v423
        %v425 = vlaneseq
        %v426 = vshrl.u32 %v425, 7
        %v427 = vsub.s32 1, %v426
        %v428 = vrot.slane %v418, %v427
        %v429 = vmin.f32 %v409, %v424
        %v430 = vmin.f32 %v409, %v428
        %v431 = vsub.f32 %v405, %v356
        %v432 = vsub.f32 %v406, %v357
        %v433 = vmax.f32 %v431, 0.0
        %v434 = vmax.f32 %v432, 0.0
        %v435 = vsub.f32 %v429, %v380
        %v436 = vsub.f32 %v430, %v381
        %v437 = vmax.f32 %v435, 0.0
        %v438 = vmax.f32 %v436, 0.0
        %v439 = vmul.f32 %v433, %v437
        %v440 = vmul.f32 %v434, %v438
        %441 = vrot.lane.b32.xlu0 %v322, 2
        %v442 = vpop.permute.xlu0 %441
        %v444 = vsub.f32 %v322, %v442
        %446 = vrot.lane.b32.xlu0 %v444, 127
        %v447 = vpop.permute.xlu0 %446
        %v449 = vmul.f32 %v444, %v447
        %v450 = vsub.f32 %v331, %v330
        %v452 = vrot.slane %v450, 5
        %v453 = vrot.slane %v452, 4
        %v455 = vmul.f32 %v450, %v453
        %457 = vset.pattern.permute.xlu0 2
        %458 = vperm.xlu0 %457, %v449
        %v459 = vpop.permute.xlu0 %458
        %v462 = vlaneseq
        %v463 = vshrl.u32 %v462, 7
        %v464 = vsub.s32 0, %v463
        %v465 = vrot.slane %v455, %v464
        %v466 = vlaneseq
        %v467 = vshrl.u32 %v466, 7
        %v468 = vsub.s32 4, %v467
        %v469 = vrot.slane %v455, %v468
        %v472 = vlaneseq
        %v473 = vshrl.u32 %v472, 7
        %v474 = vsub.s32 0, %v473
        %v475 = vrot.slane %v465, %v474
        %v476 = vlaneseq
        %v477 = vshrl.u32 %v476, 7
        %v478 = vsub.s32 0, %v477
        %v479 = vrot.slane %v469, %v478
        %v480 = vadd.f32 %v459, %v475
        %v481 = vadd.f32 %v459, %v479
        %v482 = vsub.f32 %v480, %v439
        %v483 = vsub.f32 %v481, %v440
        %v484 = vrcp.pop %v482
        %v485 = vmul.f32 %v439, %v484
        %v486 = vrcp.pop %v483
        %v487 = vmul.f32 %v440, %v486
        %v488 = vlaneseq
        %v489 = vshrl.u32 %v488, 7
        %v490 = vlaneseq
        %v491 = vand.u32 %v490, 127
        %v492 = vadd.s32 %v491, 128
        %vm493 = vcmask 1042432
        %v494 = vsel %vm493, %v485, -inf
        %v495 = vrot.slane %v494, 4
        %v496 = vmax.f32 %v494, %v495
        %v497 = vrot.slane %v496, 2
        %v498 = vmax.f32 %v496, %v497
        %v499 = vrot.slane %v498, 1
        %v500 = vmax.f32 %v498, %v499
        %v501 = vsel %vm493, %v487, -inf
        %v502 = vrot.slane %v501, 4
        %v503 = vmax.f32 %v501, %v502
        %v504 = vrot.slane %v503, 2
        %v505 = vmax.f32 %v503, %v504
        %v506 = vrot.slane %v505, 1
        %v507 = vmax.f32 %v505, %v506
        %vm508 = vcmp.eq.f32.partialorder %v485, %v500
        %vm509 = vcmp.eq.f32.partialorder %v487, %v507
        %v510 = vsel %vm508, %v489, 3
        %v511 = vsel %vm509, %v489, 3
        %v512 = vsel %vm493, %v510, 2147483647
        %v513 = vrot.slane %v512, 4
        %vm514 = vcmp.lt.s32.totalorder %v512, %v513
        %v515 = vsel %vm514, %v512, %v513
        %v516 = vrot.slane %v515, 2
        %vm517 = vcmp.lt.s32.totalorder %v515, %v516
        %v518 = vsel %vm517, %v515, %v516
        %v519 = vrot.slane %v518, 1
        %vm520 = vcmp.lt.s32.totalorder %v518, %v519
        %v521 = vsel %vm520, %v518, %v519
        %v522 = vsel %vm493, %v511, 2147483647
        %v523 = vrot.slane %v522, 4
        %vm524 = vcmp.lt.s32.totalorder %v522, %v523
        %v525 = vsel %vm524, %v522, %v523
        %v526 = vrot.slane %v525, 2
        %vm527 = vcmp.lt.s32.totalorder %v525, %v526
        %v528 = vsel %vm527, %v525, %v526
        %v529 = vrot.slane %v528, 1
        %vm530 = vcmp.lt.s32.totalorder %v528, %v529
        %v531 = vsel %vm530, %v528, %v529
        %v532 = vmax.f32 %v494, %v501
        %533 = vmax.xlane.f32.xlu0 %v532
        %v534 = vpop.xlane.xlu0 %533
        %vm535 = vcmp.eq.f32.partialorder %v485, %v534
        %vm536 = vcmp.eq.f32.partialorder %v487, %v534
        %v537 = vsel %vm535, %v491, 256
        %v538 = vsel %vm536, %v492, 256
        %v539 = vsel %vm493, %v537, 2147483647
        %v540 = vsel %vm493, %v538, 2147483647
        %vm541 = vcmp.lt.s32.totalorder %v539, %v540
        %v542 = vsel %vm541, %v539, %v540
        %v543 = vand.u32 %v542, 65535
        %v544 = vshra.s32 %v542, 16
        %v545 = vcvt.s32.f32 %v543
        %v546 = vcvt.s32.f32 %v544
        %547 = vmin.xlane.f32.xlu0 %v546
        %v548 = vpop.xlane.xlu0 %547
        %vm549 = vcmp.eq.f32.partialorder %v546, %v548
        %v550 = vsel %vm549, %v545, inf
        %551 = vmin.xlane.f32.xlu0 %v550
        %v552 = vpop.xlane.xlu0 %551
        %v553 = vcvt.f32.s32 %v552
        %v554 = vcvt.f32.s32 %v548
        %v555 = vshll.u32 %v554, 16
        %v556 = vadd.s32 %v555, %v553
        %vm557 = vcmp.eq.s32.totalorder %v556, %v491
        %vm558 = vcmp.eq.s32.totalorder %v556, %v492
        %v559 = vsel %vm557, 1, 0
        %v560 = vsel %vm558, 1, 0
        %v561 = vsel %vm493, %v559, 2147483648
        %v562 = vrot.slane %v561, 4
        %vm563 = vcmp.gt.s32.totalorder %v561, %v562
        %v564 = vsel %vm563, %v561, %v562
        %v565 = vrot.slane %v564, 2
        %vm566 = vcmp.gt.s32.totalorder %v564, %v565
        %v567 = vsel %vm566, %v564, %v565
        %v568 = vrot.slane %v567, 1
        %vm569 = vcmp.gt.s32.totalorder %v567, %v568
        %v570 = vsel %vm569, %v567, %v568
        %v571 = vsel %vm493, %v560, 2147483648
        %v572 = vrot.slane %v571, 4
        %vm573 = vcmp.gt.s32.totalorder %v571, %v572
        %v574 = vsel %vm573, %v571, %v572
        %v575 = vrot.slane %v574, 2
        %vm576 = vcmp.gt.s32.totalorder %v574, %v575
        %v577 = vsel %vm576, %v574, %v575
        %v578 = vrot.slane %v577, 1
        %vm579 = vcmp.gt.s32.totalorder %v577, %v578
        %v580 = vsel %vm579, %v577, %v578
        %vm581 = vcmp.gt.s32.totalorder %v570, 0
        %vm582 = vcmp.gt.s32.totalorder %v580, 0
        %v583 = vsel %vm557, %v489, 4294967295
        %v584 = vsel %vm558, %v489, 4294967295
        %v585 = vsel %vm493, %v583, 2147483648
        %v586 = vrot.slane %v585, 4
        %vm587 = vcmp.gt.s32.totalorder %v585, %v586
        %v588 = vsel %vm587, %v585, %v586
        %v589 = vrot.slane %v588, 2
        %vm590 = vcmp.gt.s32.totalorder %v588, %v589
        %v591 = vsel %vm590, %v588, %v589
        %v592 = vrot.slane %v591, 1
        %vm593 = vcmp.gt.s32.totalorder %v591, %v592
        %v594 = vsel %vm593, %v591, %v592
        %v595 = vsel %vm493, %v584, 2147483648
        %v596 = vrot.slane %v595, 4
        %vm597 = vcmp.gt.s32.totalorder %v595, %v596
        %v598 = vsel %vm597, %v595, %v596
        %v599 = vrot.slane %v598, 2
        %vm600 = vcmp.gt.s32.totalorder %v598, %v599
        %v601 = vsel %vm600, %v598, %v599
        %v602 = vrot.slane %v601, 1
        %vm603 = vcmp.gt.s32.totalorder %v601, %v602
        %v604 = vsel %vm603, %v601, %v602
        %v605 = vsel %vm581, %v594, %v521
        %v606 = vsel %vm582, %v604, %v531
        %v607 = vsel %vm581, 1.0, %v500
        %v608 = vsel %vm582, 1.0, %v507
        %v609 = vadd.s32 %v489, 8
        %v610 = vadd.s32 %v489, 16
        %v611 = vadd.s32 %v489, 24
        %v612 = vadd.s32 %v489, 32
        %v613 = vadd.s32 %v489, 40
        %v614 = vadd.s32 %v489, 48
        %v615 = vadd.s32 %v489, 56
        %v616 = vadd.s32 %v489, 64
        %v617 = vadd.s32 %v489, 72
        %v618 = vadd.s32 %v489, 80
        %v619 = vadd.s32 %v489, 88
        %v620 = vadd.s32 %v489, 96
        %v621 = vadd.s32 %v489, 104
        %v622 = vadd.s32 %v489, 112
        %v623 = vadd.s32 %v489, 120
        %vm624 = vcmp.eq.s32.totalorder %v605, %v489
        %vm625 = vcmp.eq.s32.totalorder %v606, %v489
        %vm626 = vcmp.eq.s32.totalorder %v605, %v609
        %vm627 = vcmp.eq.s32.totalorder %v606, %v609
        %vm628 = vcmp.eq.s32.totalorder %v605, %v610
        %vm629 = vcmp.eq.s32.totalorder %v606, %v610
        %vm630 = vcmp.eq.s32.totalorder %v605, %v611
        %vm631 = vcmp.eq.s32.totalorder %v606, %v611
        %vm632 = vcmp.eq.s32.totalorder %v605, %v612
        %vm633 = vcmp.eq.s32.totalorder %v606, %v612
        %vm634 = vcmp.eq.s32.totalorder %v605, %v613
        %vm635 = vcmp.eq.s32.totalorder %v606, %v613
        %vm636 = vcmp.eq.s32.totalorder %v605, %v614
        %vm637 = vcmp.eq.s32.totalorder %v606, %v614
        %vm638 = vcmp.eq.s32.totalorder %v605, %v615
        %vm639 = vcmp.eq.s32.totalorder %v606, %v615
        %vm640 = vcmp.eq.s32.totalorder %v605, %v616
        %vm641 = vcmp.eq.s32.totalorder %v606, %v616
        %vm642 = vcmp.eq.s32.totalorder %v605, %v617
        %vm643 = vcmp.eq.s32.totalorder %v606, %v617
        %vm644 = vcmp.eq.s32.totalorder %v605, %v618
        %vm645 = vcmp.eq.s32.totalorder %v606, %v618
        %vm646 = vcmp.eq.s32.totalorder %v605, %v619
        %vm647 = vcmp.eq.s32.totalorder %v606, %v619
        %vm648 = vcmp.eq.s32.totalorder %v605, %v620
        %vm649 = vcmp.eq.s32.totalorder %v606, %v620
        %vm650 = vcmp.eq.s32.totalorder %v605, %v621
        %vm651 = vcmp.eq.s32.totalorder %v606, %v621
        %vm652 = vcmp.eq.s32.totalorder %v605, %v622
        %vm653 = vcmp.eq.s32.totalorder %v606, %v622
        %vm654 = vcmp.eq.s32.totalorder %v605, %v623
        %vm655 = vcmp.eq.s32.totalorder %v606, %v623
        %v656 = vsel %vm624, 1, 0
        %v657 = vsel %vm625, 1, 0
        %v658 = vsel %vm626, 1, 0
        %v659 = vsel %vm627, 1, 0
        %v660 = vsel %vm628, 1, 0
        %v661 = vsel %vm629, 1, 0
        %v662 = vsel %vm630, 1, 0
        %v663 = vsel %vm631, 1, 0
        %v664 = vsel %vm632, 1, 0
        %v665 = vsel %vm633, 1, 0
        %v666 = vsel %vm634, 1, 0
        %v667 = vsel %vm635, 1, 0
        %v668 = vsel %vm636, 1, 0
        %v669 = vsel %vm637, 1, 0
        %v670 = vsel %vm638, 1, 0
        %v671 = vsel %vm639, 1, 0
        %v672 = vsel %vm640, 1, 0
        %v673 = vsel %vm641, 1, 0
        %v674 = vsel %vm642, 1, 0
        %v675 = vsel %vm643, 1, 0
        %v676 = vsel %vm644, 1, 0
        %v677 = vsel %vm645, 1, 0
        %v678 = vsel %vm646, 1, 0
        %v679 = vsel %vm647, 1, 0
        %v680 = vsel %vm648, 1, 0
        %v681 = vsel %vm649, 1, 0
        %v682 = vsel %vm650, 1, 0
        %v683 = vsel %vm651, 1, 0
        %v684 = vsel %vm652, 1, 0
        %v685 = vsel %vm653, 1, 0
        %v686 = vsel %vm654, 1, 0
        %v687 = vsel %vm655, 1, 0
        %v688 = vcvt.s32.f32 %v656
        %v689 = vcvt.s32.f32 %v657
        %v690 = vcvt.s32.f32 %v658
        %v691 = vcvt.s32.f32 %v659
        %v692 = vcvt.s32.f32 %v660
        %v693 = vcvt.s32.f32 %v661
        %v694 = vcvt.s32.f32 %v662
        %v695 = vcvt.s32.f32 %v663
        %v696 = vcvt.s32.f32 %v664
        %v697 = vcvt.s32.f32 %v665
        %v698 = vcvt.s32.f32 %v666
        %v699 = vcvt.s32.f32 %v667
        %v700 = vcvt.s32.f32 %v668
        %v701 = vcvt.s32.f32 %v669
        %v702 = vcvt.s32.f32 %v670
        %v703 = vcvt.s32.f32 %v671
        %v704 = vcvt.s32.f32 %v672
        %v705 = vcvt.s32.f32 %v673
        %v706 = vcvt.s32.f32 %v674
        %v707 = vcvt.s32.f32 %v675
        %v708 = vcvt.s32.f32 %v676
        %v709 = vcvt.s32.f32 %v677
        %v710 = vcvt.s32.f32 %v678
        %v711 = vcvt.s32.f32 %v679
        %v712 = vcvt.s32.f32 %v680
        %v713 = vcvt.s32.f32 %v681
        %v714 = vcvt.s32.f32 %v682
        %v715 = vcvt.s32.f32 %v683
        %v716 = vcvt.s32.f32 %v684
        %v717 = vcvt.s32.f32 %v685
        %v718 = vcvt.s32.f32 %v686
        %v719 = vcvt.s32.f32 %v687
        %720 = vmatprep.subr.mxu0 %v689
        %721 = vmatpush1.msra.mxu0 %v688
        %722 = vmatprep.subr.mxu0 %v691
        %723 = vmatpush1.msra.mxu0 %v690
        %724 = vmatprep.subr.mxu0 %v693
        %725 = vmatpush1.msra.mxu0 %v692
        %726 = vmatprep.subr.mxu0 %v695
        %727 = vmatpush1.msra.mxu0 %v694
        %728 = vmatprep.subr.mxu0 %v697
        %729 = vmatpush1.msra.mxu0 %v696
        %730 = vmatprep.subr.mxu0 %v699
        %731 = vmatpush1.msra.mxu0 %v698
        %732 = vmatprep.subr.mxu0 %v701
        %733 = vmatpush1.msra.mxu0 %v700
        %734 = vmatprep.subr.mxu0 %v703
        %735 = vmatpush1.msra.mxu0 %v702
        %736 = vmatprep.subr.mxu0 %v705
        %737 = vmatpush1.msra.mxu0 %v704
        %738 = vmatprep.subr.mxu0 %v707
        %739 = vmatpush1.msra.mxu0 %v706
        %740 = vmatprep.subr.mxu0 %v709
        %741 = vmatpush1.msra.mxu0 %v708
        %742 = vmatprep.subr.mxu0 %v711
        %743 = vmatpush1.msra.mxu0 %v710
        %744 = vmatprep.subr.mxu0 %v713
        %745 = vmatpush1.msra.mxu0 %v712
        %746 = vmatprep.subr.mxu0 %v715
        %747 = vmatpush1.msra.mxu0 %v714
        %748 = vmatprep.subr.mxu0 %v717
        %749 = vmatpush1.msra.mxu0 %v716
        %750 = vmatprep.subr.mxu0 %v719
        %751 = vmatpush1.msra.mxu0 %v718
        %752 = vmatprep.subr.mxu0 0.0
        %753 = vmatpush1.msra.mxu0 0.0
        %754 = vmatprep.subr.mxu0 0.0
        %755 = vmatpush1.msra.mxu0 0.0
        %756 = vmatprep.subr.mxu0 0.0
        %757 = vmatpush1.msra.mxu0 0.0
        %758 = vmatprep.subr.mxu0 0.0
        %759 = vmatpush1.msra.mxu0 0.0
        %760 = vmatprep.subr.mxu0 0.0
        %761 = vmatpush1.msra.mxu0 0.0
        %762 = vmatprep.subr.mxu0 0.0
        %763 = vmatpush1.msra.mxu0 0.0
        %764 = vmatprep.subr.mxu0 0.0
        %765 = vmatpush1.msra.mxu0 0.0
        %766 = vmatprep.subr.mxu0 0.0
        %767 = vmatpush1.msra.mxu0 0.0
        %768 = vmatprep.subr.mxu0 0.0
        %769 = vmatpush1.msra.mxu0 0.0
        %770 = vmatprep.subr.mxu0 0.0
        %771 = vmatpush1.msra.mxu0 0.0
        %772 = vmatprep.subr.mxu0 0.0
        %773 = vmatpush1.msra.mxu0 0.0
        %774 = vmatprep.subr.mxu0 0.0
        %775 = vmatpush1.msra.mxu0 0.0
        %776 = vmatprep.subr.mxu0 0.0
        %777 = vmatpush1.msra.mxu0 0.0
        %778 = vmatprep.subr.mxu0 0.0
        %779 = vmatpush1.msra.mxu0 0.0
        %780 = vmatprep.subr.mxu0 0.0
        %781 = vmatpush1.msra.mxu0 0.0
        %782 = vmatprep.subr.mxu0 0.0
        %783 = vmatpush1.msra.mxu0 0.0
        %784 = vmatprep.mubr.f32.mxu0 0.0
        %785 = vmatmul.mubr.f32.gmra.mrb[0].mxu0 %v323
        %v786 = vpop.f32.mrb[0].mxu0
        %v787 = vadd.f32 0.0, %v786
        %v788 = vpop.f32.mrb[0].mxu0
        %v789 = vadd.f32 0.0, %v788
        %790 = vdwg.mxu0
        %vm791 = vcmp.lt.f32.partialorder %v607, 0.5
        %vm792 = vcmp.lt.f32.partialorder %v608, 0.5
        %v793 = vsel %vm791, 0.0, %v787
        %v794 = vsel %vm792, 0.0, %v789
        %vm795 = vcmp.ne.f32.partialorder %v793, 0.0
        %vm796 = vcmp.ne.f32.partialorder %v794, 0.0
        %v797 = vsel %vm795, 1, 0
        %v798 = vsel %vm796, 1, 0
        %v799 = vcvt.s32.f32 %v797
        %v800 = vcvt.s32.f32 %v798
        %v803 = vrot.slane %v787, 2
        %v804 = vrot.slane %v789, 2
        %v807 = vadd.f32 %v787, %v803
        %v808 = vadd.f32 %v789, %v804
        %v809 = vmul.f32 %v807, 0.5
        %v810 = vmul.f32 %v808, 0.5
        %v811 = vrot.slane %v787, 6
        %v812 = vrot.slane %v789, 6
        %v815 = vsub.f32 %v787, %v811
        %v816 = vsub.f32 %v789, %v812
        %v817 = vmax.f32 %v815, 1e-10
        %v818 = vmax.f32 %v816, 1e-10
        %v820 = vlaneseq
        %v821 = vshrl.u32 %v820, 7
        %v822 = vsub.s32 0, %v821
        %v823 = vrot.slane %v324, %v822
        %v824 = vlaneseq
        %v825 = vshrl.u32 %v824, 7
        %v826 = vsub.s32 4, %v825
        %v827 = vrot.slane %v324, %v826
        %v830 = vsub.f32 %v809, %v823
        %v831 = vsub.f32 %v810, %v827
        %v832 = vmul.f32 %v324, 0.1
        %v834 = vlaneseq
        %v835 = vshrl.u32 %v834, 7
        %v836 = vsub.s32 2, %v835
        %v837 = vrot.slane %v832, %v836
        %v838 = vlaneseq
        %v839 = vshrl.u32 %v838, 7
        %v840 = vsub.s32 6, %v839
        %v841 = vrot.slane %v832, %v840
        %v844 = vrcp.pop %v837
        %v845 = vmul.f32 %v830, %v844
        %v846 = vrcp.pop %v841
        %v847 = vmul.f32 %v831, %v846
        %v848 = vlaneseq
        %v849 = vshrl.u32 %v848, 7
        %v850 = vsub.s32 1, %v849
        %v851 = vrot.slane %v324, %v850
        %v852 = vlaneseq
        %v853 = vshrl.u32 %v852, 7
        %v854 = vsub.s32 5, %v853
        %v855 = vrot.slane %v324, %v854
        %v858 = vsub.f32 %v809, %v851
        %v859 = vsub.f32 %v810, %v855
        %v860 = vlaneseq
        %v861 = vshrl.u32 %v860, 7
        %v862 = vsub.s32 3, %v861
        %v863 = vrot.slane %v832, %v862
        %v864 = vlaneseq
        %v865 = vshrl.u32 %v864, 7
        %v866 = vsub.s32 7, %v865
        %v867 = vrot.slane %v832, %v866
        %v870 = vrcp.pop %v863
        %v871 = vmul.f32 %v858, %v870
        %v872 = vrcp.pop %v867
        %v873 = vmul.f32 %v859, %v872
        %v874 = vlaneseq
        %v875 = vshrl.u32 %v874, 7
        %v876 = vsub.s32 2, %v875
        %v877 = vrot.slane %v324, %v876
        %v878 = vlaneseq
        %v879 = vshrl.u32 %v878, 7
        %v880 = vsub.s32 6, %v879
        %v881 = vrot.slane %v324, %v880
        %v884 = vrcp.pop %v877
        %v885 = vmul.f32 %v817, %v884
        %v886 = vrcp.pop %v881
        %v887 = vmul.f32 %v818, %v886
        %v888 = vlog2.pop %v885
        %v889 = vmul.f32 %v888, 0.6931472
        %v890 = vlog2.pop %v887
        %v891 = vmul.f32 %v890, 0.6931472
        %v892 = vrcp.pop 0.2
        %v893 = vmul.f32 %v889, %v892
        %v894 = vmul.f32 %v891, %v892
        %v895 = vlaneseq
        %v896 = vshrl.u32 %v895, 7
        %v897 = vsub.s32 3, %v896
        %v898 = vrot.slane %v324, %v897
        %v899 = vlaneseq
        %v900 = vshrl.u32 %v899, 7
        %v901 = vsub.s32 7, %v900
        %v902 = vrot.slane %v324, %v901
        %v905 = vrcp.pop %v898
        %v906 = vmul.f32 %v817, %v905
        %v907 = vrcp.pop %v902
        %v908 = vmul.f32 %v818, %v907
        %v909 = vlog2.pop %v906
        %v910 = vmul.f32 %v909, 0.6931472
        %v911 = vlog2.pop %v908
        %v912 = vmul.f32 %v911, 0.6931472
        %v913 = vmul.f32 %v910, %v892
        %v914 = vmul.f32 %v912, %v892
        %v915 = vld [vmem:[%s266] sm:$0xff]
        %v918 = vcombine.low %v845, %v847
        %v920 = vsub.f32 %v915, %v918
        %v921 = vand.u32 2147483647, %v920
        %v924 = vcombine.low %v871, %v873
        %v926 = vsub.f32 %v915, %v924
        %v927 = vand.u32 2147483647, %v926
        %v929 = vrot.slane %v927, 5
        %v930 = vrot.slane %v929, 4
        %v932 = vadd.f32 %v921, %v930
        %v935 = vcombine.low %v893, %v894
        %v937 = vsub.f32 %v915, %v935
        %v938 = vand.u32 2147483647, %v937
        %v940 = vrot.slane %v938, 6
        %v941 = vrot.slane %v940, 4
        %v943 = vadd.f32 %v932, %v941
        %v946 = vcombine.low %v913, %v914
        %v948 = vsub.f32 %v915, %v946
        %v949 = vand.u32 2147483647, %v948
        %v951 = vrot.slane %v949, 7
        %v952 = vrot.slane %v951, 4
        %v954 = vadd.f32 %v943, %v952
        %v957 = vcombine.high %v799, %v800
        %v959 = vmul.f32 %v954, %v957
        %v961 = vlaneseq
        %v962 = vshrl.u32 %v961, 7
        %v963 = vsub.s32 0, %v962
        %v964 = vrot.slane %v959, %v963
        %v965 = vlaneseq
        %v966 = vshrl.u32 %v965, 7
        %v967 = vsub.s32 4, %v966
        %v968 = vrot.slane %v959, %v967
        %vm971 = vcmask 1040384
        %v972 = vsel %vm971, %v964, 0.0
        %v973 = vsel %vm971, %v968, 0.0
        %v974 = vadd.f32 %v972, %v973
        %975 = vadd.xlane.f32.xlu0 %v974
        %v976 = vpop.xlane.xlu0 %975
        %vm977 = vcmask 1044484
        %v978 = vsel %vm977, %v799, 0.0
        %v979 = vsel %vm977, %v800, 0.0
        %v980 = vadd.f32 %v978, %v979
        %981 = vadd.xlane.f32.xlu0 %v980
        %v982 = vpop.xlane.xlu0 %981
        %v983 = vld [vmem:[%s275] sm:$0xff]
        %v984 = vld [vmem:[%s275 + $0x8] sm:$0xff]
        %v985 = vrot.slane %v983, 4
        %v986 = vmax.f32 %v983, %v985
        %v987 = vrot.slane %v986, 2
        %v988 = vmax.f32 %v986, %v987
        %v989 = vrot.slane %v988, 1
        %v990 = vmax.f32 %v988, %v989
        %v991 = vrot.slane %v984, 4
        %v992 = vmax.f32 %v984, %v991
        %v993 = vrot.slane %v992, 2
        %v994 = vmax.f32 %v992, %v993
        %v995 = vrot.slane %v994, 1
        %v996 = vmax.f32 %v994, %v995
        %v997 = vsub.f32 %v983, %v990
        %v998 = vsub.f32 %v984, %v996
        %v999 = vmul.f32 %v997, 1.442695
        %v1000 = vpow.pop %v999
        %v1001 = vmul.f32 %v998, 1.442695
        %v1002 = vpow.pop %v1001
        %v1003 = vrot.slane %v1000, 4
        %v1004 = vadd.f32 %v1000, %v1003
        %v1005 = vrot.slane %v1004, 2
        %v1006 = vadd.f32 %v1004, %v1005
        %v1007 = vrot.slane %v1006, 1
        %v1008 = vadd.f32 %v1006, %v1007
        %v1009 = vrot.slane %v1002, 4
        %v1010 = vadd.f32 %v1002, %v1009
        %v1011 = vrot.slane %v1010, 2
        %v1012 = vadd.f32 %v1010, %v1011
        %v1013 = vrot.slane %v1012, 1
        %v1014 = vadd.f32 %v1012, %v1013
        %v1015 = vlog2.pop %v1008
        %v1016 = vmul.f32 %v1015, 0.6931472
        %v1017 = vlog2.pop %v1014
        %v1018 = vmul.f32 %v1017, 0.6931472
        %v1019 = vadd.f32 %v990, %v1016
        %v1020 = vadd.f32 %v996, %v1018
        %v1021 = vcvt.s32.f32 %v489
        %v1022 = vlaneseq
        %v1023 = vshrl.u32 %v1022, 7
        %v1024 = vsub.s32 4, %v1023
        %v1025 = vrot.slane %v793, %v1024
        %v1026 = vlaneseq
        %v1027 = vshrl.u32 %v1026, 7
        %v1028 = vsub.s32 4, %v1027
        %v1029 = vrot.slane %v794, %v1028
        %vm1030 = vcmp.eq.f32.partialorder %v1021, %v1025
        %vm1031 = vcmp.eq.f32.partialorder %v1021, %v1029
        %v1032 = vsel %vm1030, 1, 0
        %v1033 = vsel %vm1031, 1, 0
        %v1034 = vcvt.s32.f32 %v1032
        %v1035 = vcvt.s32.f32 %v1033
        %v1036 = vmul.f32 %v983, %v1034
        %v1037 = vmul.f32 %v984, %v1035
        %v1038 = vrot.slane %v1036, 4
        %v1039 = vadd.f32 %v1036, %v1038
        %v1040 = vrot.slane %v1039, 2
        %v1041 = vadd.f32 %v1039, %v1040
        %v1042 = vrot.slane %v1041, 1
        %v1043 = vadd.f32 %v1041, %v1042
        %v1044 = vrot.slane %v1037, 4
        %v1045 = vadd.f32 %v1037, %v1044
        %v1046 = vrot.slane %v1045, 2
        %v1047 = vadd.f32 %v1045, %v1046
        %v1048 = vrot.slane %v1047, 1
        %v1049 = vadd.f32 %v1047, %v1048
        %v1050 = vsub.f32 %v1019, %v1043
        %v1051 = vsub.f32 %v1020, %v1049
        %v1052 = vmul.f32 %v1050, %v799
        %v1053 = vmul.f32 %v1051, %v800
        %v1054 = vsel %vm977, %v1052, 0.0
        %v1055 = vsel %vm977, %v1053, 0.0
        %v1056 = vadd.f32 %v1054, %v1055
        %1057 = vadd.xlane.f32.xlu0 %v1056
        %v1058 = vpop.xlane.xlu0 %1057
        %v1059 = vsub.f32 1.0, %v799
        %v1060 = vsub.f32 1.0, %v800
        %v1061 = vmul.f32 %v1050, %v1059
        %v1062 = vmul.f32 %v1051, %v1060
        %v1063 = vlaneseq
        %v1064 = vshrl.u32 %v1063, 7
        %v1065 = vsub.s32 4, %v1064
        %v1066 = vrot.slane %v1061, %v1065
        %1068 = vbcast.lane.b32.xlu0 %v1066, 256
        %v1069 = vpop.permute.xlu0 %1068
        %s1071 = sor.u32 256, 8
        %1072 = vbcast.lane.b32.xlu0 %v1066, %s1071
        %v1073 = vpop.permute.xlu0 %1072
        %s1075 = sor.u32 256, 16
        %1076 = vbcast.lane.b32.xlu0 %v1066, %s1075
        %v1077 = vpop.permute.xlu0 %1076
        %s1079 = sor.u32 256, 24
        %1080 = vbcast.lane.b32.xlu0 %v1066, %s1079
        %v1081 = vpop.permute.xlu0 %1080
        %s1083 = sor.u32 256, 32
        %1084 = vbcast.lane.b32.xlu0 %v1066, %s1083
        %v1085 = vpop.permute.xlu0 %1084
        %s1087 = sor.u32 256, 40
        %1088 = vbcast.lane.b32.xlu0 %v1066, %s1087
        %v1089 = vpop.permute.xlu0 %1088
        %s1091 = sor.u32 256, 48
        %1092 = vbcast.lane.b32.xlu0 %v1066, %s1091
        %v1093 = vpop.permute.xlu0 %1092
        %s1095 = sor.u32 256, 56
        %1096 = vbcast.lane.b32.xlu0 %v1066, %s1095
        %v1097 = vpop.permute.xlu0 %1096
        %s1099 = sor.u32 256, 64
        %1100 = vbcast.lane.b32.xlu0 %v1066, %s1099
        %v1101 = vpop.permute.xlu0 %1100
        %s1103 = sor.u32 256, 72
        %1104 = vbcast.lane.b32.xlu0 %v1066, %s1103
        %v1105 = vpop.permute.xlu0 %1104
        %s1107 = sor.u32 256, 80
        %1108 = vbcast.lane.b32.xlu0 %v1066, %s1107
        %v1109 = vpop.permute.xlu0 %1108
        %s1111 = sor.u32 256, 88
        %1112 = vbcast.lane.b32.xlu0 %v1066, %s1111
        %v1113 = vpop.permute.xlu0 %1112
        %s1115 = sor.u32 256, 96
        %1116 = vbcast.lane.b32.xlu0 %v1066, %s1115
        %v1117 = vpop.permute.xlu0 %1116
        %s1119 = sor.u32 256, 104
        %1120 = vbcast.lane.b32.xlu0 %v1066, %s1119
        %v1121 = vpop.permute.xlu0 %1120
        %s1123 = sor.u32 256, 112
        %1124 = vbcast.lane.b32.xlu0 %v1066, %s1123
        %v1125 = vpop.permute.xlu0 %1124
        %s1127 = sor.u32 256, 120
        %1128 = vbcast.lane.b32.xlu0 %v1066, %s1127
        %v1129 = vpop.permute.xlu0 %1128
        %v1130 = vlaneseq
        %v1131 = vshrl.u32 %v1130, 7
        %v1132 = vsub.s32 4, %v1131
        %v1133 = vrot.slane %v1062, %v1132
        %1135 = vbcast.lane.b32.xlu0 %v1133, 256
        %v1136 = vpop.permute.xlu0 %1135
        %s1138 = sor.u32 256, 8
        %1139 = vbcast.lane.b32.xlu0 %v1133, %s1138
        %v1140 = vpop.permute.xlu0 %1139
        %s1142 = sor.u32 256, 16
        %1143 = vbcast.lane.b32.xlu0 %v1133, %s1142
        %v1144 = vpop.permute.xlu0 %1143
        %s1146 = sor.u32 256, 24
        %1147 = vbcast.lane.b32.xlu0 %v1133, %s1146
        %v1148 = vpop.permute.xlu0 %1147
        %s1150 = sor.u32 256, 32
        %1151 = vbcast.lane.b32.xlu0 %v1133, %s1150
        %v1152 = vpop.permute.xlu0 %1151
        %s1154 = sor.u32 256, 40
        %1155 = vbcast.lane.b32.xlu0 %v1133, %s1154
        %v1156 = vpop.permute.xlu0 %1155
        %s1158 = sor.u32 256, 48
        %1159 = vbcast.lane.b32.xlu0 %v1133, %s1158
        %v1160 = vpop.permute.xlu0 %1159
        %s1162 = sor.u32 256, 56
        %1163 = vbcast.lane.b32.xlu0 %v1133, %s1162
        %v1164 = vpop.permute.xlu0 %1163
        %s1166 = sor.u32 256, 64
        %1167 = vbcast.lane.b32.xlu0 %v1133, %s1166
        %v1168 = vpop.permute.xlu0 %1167
        %s1170 = sor.u32 256, 72
        %1171 = vbcast.lane.b32.xlu0 %v1133, %s1170
        %v1172 = vpop.permute.xlu0 %1171
        %s1174 = sor.u32 256, 80
        %1175 = vbcast.lane.b32.xlu0 %v1133, %s1174
        %v1176 = vpop.permute.xlu0 %1175
        %s1178 = sor.u32 256, 88
        %1179 = vbcast.lane.b32.xlu0 %v1133, %s1178
        %v1180 = vpop.permute.xlu0 %1179
        %s1182 = sor.u32 256, 96
        %1183 = vbcast.lane.b32.xlu0 %v1133, %s1182
        %v1184 = vpop.permute.xlu0 %1183
        %s1186 = sor.u32 256, 104
        %1187 = vbcast.lane.b32.xlu0 %v1133, %s1186
        %v1188 = vpop.permute.xlu0 %1187
        %s1190 = sor.u32 256, 112
        %1191 = vbcast.lane.b32.xlu0 %v1133, %s1190
        %v1192 = vpop.permute.xlu0 %1191
        %s1194 = sor.u32 256, 120
        %1195 = vbcast.lane.b32.xlu0 %v1133, %s1194
        %v1196 = vpop.permute.xlu0 %1195
        %vm1197 = vcmask 7168
        %1198 = vst.msk [vmem:[#allocation2] sm:$0xff] %vm1197, %v1069
        %1199 = vst.msk [vmem:[#allocation2 + $0x8] sm:$0xff] %vm1197, %v1073
        %1200 = vst.msk [vmem:[#allocation2 + $0x10] sm:$0xff] %vm1197, %v1077
        %1201 = vst.msk [vmem:[#allocation2 + $0x18] sm:$0xff] %vm1197, %v1081
        %1202 = vst.msk [vmem:[#allocation2 + $0x20] sm:$0xff] %vm1197, %v1085
        %1203 = vst.msk [vmem:[#allocation2 + $0x28] sm:$0xff] %vm1197, %v1089
        %1204 = vst.msk [vmem:[#allocation2 + $0x30] sm:$0xff] %vm1197, %v1093
        %1205 = vst.msk [vmem:[#allocation2 + $0x38] sm:$0xff] %vm1197, %v1097
        %1206 = vst.msk [vmem:[#allocation2 + $0x40] sm:$0xff] %vm1197, %v1101
        %1207 = vst.msk [vmem:[#allocation2 + $0x48] sm:$0xff] %vm1197, %v1105
        %1208 = vst.msk [vmem:[#allocation2 + $0x50] sm:$0xff] %vm1197, %v1109
        %1209 = vst.msk [vmem:[#allocation2 + $0x58] sm:$0xff] %vm1197, %v1113
        %1210 = vst.msk [vmem:[#allocation2 + $0x60] sm:$0xff] %vm1197, %v1117
        %1211 = vst.msk [vmem:[#allocation2 + $0x68] sm:$0xff] %vm1197, %v1121
        %1212 = vst.msk [vmem:[#allocation2 + $0x70] sm:$0xff] %vm1197, %v1125
        %1213 = vst.msk [vmem:[#allocation2 + $0x78] sm:$0xff] %vm1197, %v1129
        %1214 = vst.msk [vmem:[#allocation2 + $0x80] sm:$0xff] %vm1197, %v1136
        %1215 = vst.msk [vmem:[#allocation2 + $0x88] sm:$0xff] %vm1197, %v1140
        %1216 = vst.msk [vmem:[#allocation2 + $0x90] sm:$0xff] %vm1197, %v1144
        %1217 = vst.msk [vmem:[#allocation2 + $0x98] sm:$0xff] %vm1197, %v1148
        %1218 = vst.msk [vmem:[#allocation2 + $0xa0] sm:$0xff] %vm1197, %v1152
        %1219 = vst.msk [vmem:[#allocation2 + $0xa8] sm:$0xff] %vm1197, %v1156
        %1220 = vst.msk [vmem:[#allocation2 + $0xb0] sm:$0xff] %vm1197, %v1160
        %1221 = vst.msk [vmem:[#allocation2 + $0xb8] sm:$0xff] %vm1197, %v1164
        %1222 = vst.msk [vmem:[#allocation2 + $0xc0] sm:$0xff] %vm1197, %v1168
        %1223 = vst.msk [vmem:[#allocation2 + $0xc8] sm:$0xff] %vm1197, %v1172
        %1224 = vst.msk [vmem:[#allocation2 + $0xd0] sm:$0xff] %vm1197, %v1176
        %1225 = vst.msk [vmem:[#allocation2 + $0xd8] sm:$0xff] %vm1197, %v1180
        %1226 = vst.msk [vmem:[#allocation2 + $0xe0] sm:$0xff] %vm1197, %v1184
        %1227 = vst.msk [vmem:[#allocation2 + $0xe8] sm:$0xff] %vm1197, %v1188
        %1228 = vst.msk [vmem:[#allocation2 + $0xf0] sm:$0xff] %vm1197, %v1192
        %1229 = vst.msk [vmem:[#allocation2 + $0xf8] sm:$0xff] %vm1197, %v1196
        %v1230 = vld [vmem:[#allocation2] sm:$0xff]
        %v1231 = vld [vmem:[#allocation2 + $0x8] sm:$0xff]
        %v1232 = vld [vmem:[#allocation2 + $0x10] sm:$0xff]
        %v1233 = vld [vmem:[#allocation2 + $0x18] sm:$0xff]
        %v1234 = vld [vmem:[#allocation2 + $0x20] sm:$0xff]
        %v1235 = vld [vmem:[#allocation2 + $0x28] sm:$0xff]
        %v1236 = vld [vmem:[#allocation2 + $0x30] sm:$0xff]
        %v1237 = vld [vmem:[#allocation2 + $0x38] sm:$0xff]
        %v1238 = vld [vmem:[#allocation2 + $0x40] sm:$0xff]
        %v1239 = vld [vmem:[#allocation2 + $0x48] sm:$0xff]
        %v1240 = vld [vmem:[#allocation2 + $0x50] sm:$0xff]
        %v1241 = vld [vmem:[#allocation2 + $0x58] sm:$0xff]
        %v1242 = vld [vmem:[#allocation2 + $0x60] sm:$0xff]
        %v1243 = vld [vmem:[#allocation2 + $0x68] sm:$0xff]
        %v1244 = vld [vmem:[#allocation2 + $0x70] sm:$0xff]
        %v1245 = vld [vmem:[#allocation2 + $0x78] sm:$0xff]
        %v1246 = vld [vmem:[#allocation2 + $0x80] sm:$0xff]
        %v1247 = vld [vmem:[#allocation2 + $0x88] sm:$0xff]
        %v1248 = vld [vmem:[#allocation2 + $0x90] sm:$0xff]
        %v1249 = vld [vmem:[#allocation2 + $0x98] sm:$0xff]
        %v1250 = vld [vmem:[#allocation2 + $0xa0] sm:$0xff]
        %v1251 = vld [vmem:[#allocation2 + $0xa8] sm:$0xff]
        %v1252 = vld [vmem:[#allocation2 + $0xb0] sm:$0xff]
        %v1253 = vld [vmem:[#allocation2 + $0xb8] sm:$0xff]
        %v1254 = vld [vmem:[#allocation2 + $0xc0] sm:$0xff]
        %v1255 = vld [vmem:[#allocation2 + $0xc8] sm:$0xff]
        %v1256 = vld [vmem:[#allocation2 + $0xd0] sm:$0xff]
        %v1257 = vld [vmem:[#allocation2 + $0xd8] sm:$0xff]
        %v1258 = vld [vmem:[#allocation2 + $0xe0] sm:$0xff]
        %v1259 = vld [vmem:[#allocation2 + $0xe8] sm:$0xff]
        %v1260 = vld [vmem:[#allocation2 + $0xf0] sm:$0xff]
        %v1261 = vld [vmem:[#allocation2 + $0xf8] sm:$0xff]
        %v1262 = vadd.s32 %v489, 128
        %v1263 = vadd.s32 %v489, 136
        %v1264 = vadd.s32 %v489, 144
        %v1265 = vadd.s32 %v489, 152
        %v1266 = vadd.s32 %v489, 160
        %v1267 = vadd.s32 %v489, 168
        %v1268 = vadd.s32 %v489, 176
        %v1269 = vadd.s32 %v489, 184
        %v1270 = vadd.s32 %v489, 192
        %v1271 = vadd.s32 %v489, 200
        %v1272 = vadd.s32 %v489, 208
        %v1273 = vadd.s32 %v489, 216
        %v1274 = vadd.s32 %v489, 224
        %v1275 = vadd.s32 %v489, 232
        %v1276 = vadd.s32 %v489, 240
        %v1277 = vadd.s32 %v489, 248
        %1279 = vset.pattern.permute.xlu0 0
        %1280 = vperm.xlu0 %1279, %v1230
        %v1281 = vpop.permute.xlu0 %1280
        %1284 = vset.pattern.permute.xlu0 0
        %1285 = vperm.xlu0 %1284, %v1231
        %v1286 = vpop.permute.xlu0 %1285
        %1289 = vset.pattern.permute.xlu0 0
        %1290 = vperm.xlu0 %1289, %v1232
        %v1291 = vpop.permute.xlu0 %1290
        %1294 = vset.pattern.permute.xlu0 0
        %1295 = vperm.xlu0 %1294, %v1233
        %v1296 = vpop.permute.xlu0 %1295
        %1299 = vset.pattern.permute.xlu0 0
        %1300 = vperm.xlu0 %1299, %v1234
        %v1301 = vpop.permute.xlu0 %1300
        %1304 = vset.pattern.permute.xlu0 0
        %1305 = vperm.xlu0 %1304, %v1235
        %v1306 = vpop.permute.xlu0 %1305
        %1309 = vset.pattern.permute.xlu0 0
        %1310 = vperm.xlu0 %1309, %v1236
        %v1311 = vpop.permute.xlu0 %1310
        %1314 = vset.pattern.permute.xlu0 0
        %1315 = vperm.xlu0 %1314, %v1237
        %v1316 = vpop.permute.xlu0 %1315
        %1319 = vset.pattern.permute.xlu0 0
        %1320 = vperm.xlu0 %1319, %v1238
        %v1321 = vpop.permute.xlu0 %1320
        %1324 = vset.pattern.permute.xlu0 0
        %1325 = vperm.xlu0 %1324, %v1239
        %v1326 = vpop.permute.xlu0 %1325
        %1329 = vset.pattern.permute.xlu0 0
        %1330 = vperm.xlu0 %1329, %v1240
        %v1331 = vpop.permute.xlu0 %1330
        %1334 = vset.pattern.permute.xlu0 0
        %1335 = vperm.xlu0 %1334, %v1241
        %v1336 = vpop.permute.xlu0 %1335
        %1339 = vset.pattern.permute.xlu0 0
        %1340 = vperm.xlu0 %1339, %v1242
        %v1341 = vpop.permute.xlu0 %1340
        %1344 = vset.pattern.permute.xlu0 0
        %1345 = vperm.xlu0 %1344, %v1243
        %v1346 = vpop.permute.xlu0 %1345
        %1349 = vset.pattern.permute.xlu0 0
        %1350 = vperm.xlu0 %1349, %v1244
        %v1351 = vpop.permute.xlu0 %1350
        %1354 = vset.pattern.permute.xlu0 0
        %1355 = vperm.xlu0 %1354, %v1245
        %v1356 = vpop.permute.xlu0 %1355
        %1359 = vset.pattern.permute.xlu0 0
        %1360 = vperm.xlu0 %1359, %v1246
        %v1361 = vpop.permute.xlu0 %1360
        %1364 = vset.pattern.permute.xlu0 0
        %1365 = vperm.xlu0 %1364, %v1247
        %v1366 = vpop.permute.xlu0 %1365
        %1369 = vset.pattern.permute.xlu0 0
        %1370 = vperm.xlu0 %1369, %v1248
        %v1371 = vpop.permute.xlu0 %1370
        %1374 = vset.pattern.permute.xlu0 0
        %1375 = vperm.xlu0 %1374, %v1249
        %v1376 = vpop.permute.xlu0 %1375
        %1379 = vset.pattern.permute.xlu0 0
        %1380 = vperm.xlu0 %1379, %v1250
        %v1381 = vpop.permute.xlu0 %1380
        %1384 = vset.pattern.permute.xlu0 0
        %1385 = vperm.xlu0 %1384, %v1251
        %v1386 = vpop.permute.xlu0 %1385
        %1389 = vset.pattern.permute.xlu0 0
        %1390 = vperm.xlu0 %1389, %v1252
        %v1391 = vpop.permute.xlu0 %1390
        %1394 = vset.pattern.permute.xlu0 0
        %1395 = vperm.xlu0 %1394, %v1253
        %v1396 = vpop.permute.xlu0 %1395
        %1399 = vset.pattern.permute.xlu0 0
        %1400 = vperm.xlu0 %1399, %v1254
        %v1401 = vpop.permute.xlu0 %1400
        %1404 = vset.pattern.permute.xlu0 0
        %1405 = vperm.xlu0 %1404, %v1255
        %v1406 = vpop.permute.xlu0 %1405
        %1409 = vset.pattern.permute.xlu0 0
        %1410 = vperm.xlu0 %1409, %v1256
        %v1411 = vpop.permute.xlu0 %1410
        %1414 = vset.pattern.permute.xlu0 0
        %1415 = vperm.xlu0 %1414, %v1257
        %v1416 = vpop.permute.xlu0 %1415
        %1419 = vset.pattern.permute.xlu0 0
        %1420 = vperm.xlu0 %1419, %v1258
        %v1421 = vpop.permute.xlu0 %1420
        %1424 = vset.pattern.permute.xlu0 0
        %1425 = vperm.xlu0 %1424, %v1259
        %v1426 = vpop.permute.xlu0 %1425
        %1429 = vset.pattern.permute.xlu0 0
        %1430 = vperm.xlu0 %1429, %v1260
        %v1431 = vpop.permute.xlu0 %1430
        %1434 = vset.pattern.permute.xlu0 0
        %1435 = vperm.xlu0 %1434, %v1261
        %v1436 = vpop.permute.xlu0 %1435
        %vm1438 = vcmp.gt.f32.partialorder %v1281, %v1066
        %vm1439 = vcmp.gt.f32.partialorder %v1281, %v1133
        %vm1440 = vcmp.gt.f32.partialorder %v1286, %v1066
        %vm1441 = vcmp.gt.f32.partialorder %v1286, %v1133
        %vm1442 = vcmp.gt.f32.partialorder %v1291, %v1066
        %vm1443 = vcmp.gt.f32.partialorder %v1291, %v1133
        %vm1444 = vcmp.gt.f32.partialorder %v1296, %v1066
        %vm1445 = vcmp.gt.f32.partialorder %v1296, %v1133
        %vm1446 = vcmp.gt.f32.partialorder %v1301, %v1066
        %vm1447 = vcmp.gt.f32.partialorder %v1301, %v1133
        %vm1448 = vcmp.gt.f32.partialorder %v1306, %v1066
        %vm1449 = vcmp.gt.f32.partialorder %v1306, %v1133
        %vm1450 = vcmp.gt.f32.partialorder %v1311, %v1066
        %vm1451 = vcmp.gt.f32.partialorder %v1311, %v1133
        %vm1452 = vcmp.gt.f32.partialorder %v1316, %v1066
        %vm1453 = vcmp.gt.f32.partialorder %v1316, %v1133
        %vm1454 = vcmp.gt.f32.partialorder %v1321, %v1066
        %vm1455 = vcmp.gt.f32.partialorder %v1321, %v1133
        %vm1456 = vcmp.gt.f32.partialorder %v1326, %v1066
        %vm1457 = vcmp.gt.f32.partialorder %v1326, %v1133
        %vm1458 = vcmp.gt.f32.partialorder %v1331, %v1066
        %vm1459 = vcmp.gt.f32.partialorder %v1331, %v1133
        %vm1460 = vcmp.gt.f32.partialorder %v1336, %v1066
        %vm1461 = vcmp.gt.f32.partialorder %v1336, %v1133
        %vm1462 = vcmp.gt.f32.partialorder %v1341, %v1066
        %vm1463 = vcmp.gt.f32.partialorder %v1341, %v1133
        %vm1464 = vcmp.gt.f32.partialorder %v1346, %v1066
        %vm1465 = vcmp.gt.f32.partialorder %v1346, %v1133
        %vm1466 = vcmp.gt.f32.partialorder %v1351, %v1066
        %vm1467 = vcmp.gt.f32.partialorder %v1351, %v1133
        %vm1468 = vcmp.gt.f32.partialorder %v1356, %v1066
        %vm1469 = vcmp.gt.f32.partialorder %v1356, %v1133
        %vm1470 = vcmp.gt.f32.partialorder %v1361, %v1066
        %vm1471 = vcmp.gt.f32.partialorder %v1361, %v1133
        %vm1472 = vcmp.gt.f32.partialorder %v1366, %v1066
        %vm1473 = vcmp.gt.f32.partialorder %v1366, %v1133
        %vm1474 = vcmp.gt.f32.partialorder %v1371, %v1066
        %vm1475 = vcmp.gt.f32.partialorder %v1371, %v1133
        %vm1476 = vcmp.gt.f32.partialorder %v1376, %v1066
        %vm1477 = vcmp.gt.f32.partialorder %v1376, %v1133
        %vm1478 = vcmp.gt.f32.partialorder %v1381, %v1066
        %vm1479 = vcmp.gt.f32.partialorder %v1381, %v1133
        %vm1480 = vcmp.gt.f32.partialorder %v1386, %v1066
        %vm1481 = vcmp.gt.f32.partialorder %v1386, %v1133
        %vm1482 = vcmp.gt.f32.partialorder %v1391, %v1066
        %vm1483 = vcmp.gt.f32.partialorder %v1391, %v1133
        %vm1484 = vcmp.gt.f32.partialorder %v1396, %v1066
        %vm1485 = vcmp.gt.f32.partialorder %v1396, %v1133
        %vm1486 = vcmp.gt.f32.partialorder %v1401, %v1066
        %vm1487 = vcmp.gt.f32.partialorder %v1401, %v1133
        %vm1488 = vcmp.gt.f32.partialorder %v1406, %v1066
        %vm1489 = vcmp.gt.f32.partialorder %v1406, %v1133
        %vm1490 = vcmp.gt.f32.partialorder %v1411, %v1066
        %vm1491 = vcmp.gt.f32.partialorder %v1411, %v1133
        %vm1492 = vcmp.gt.f32.partialorder %v1416, %v1066
        %vm1493 = vcmp.gt.f32.partialorder %v1416, %v1133
        %vm1494 = vcmp.gt.f32.partialorder %v1421, %v1066
        %vm1495 = vcmp.gt.f32.partialorder %v1421, %v1133
        %vm1496 = vcmp.gt.f32.partialorder %v1426, %v1066
        %vm1497 = vcmp.gt.f32.partialorder %v1426, %v1133
        %vm1498 = vcmp.gt.f32.partialorder %v1431, %v1066
        %vm1499 = vcmp.gt.f32.partialorder %v1431, %v1133
        %vm1500 = vcmp.gt.f32.partialorder %v1436, %v1066
        %vm1501 = vcmp.gt.f32.partialorder %v1436, %v1133
        %vm1502 = vcmp.eq.f32.partialorder %v1281, %v1066
        %vm1503 = vcmp.eq.f32.partialorder %v1281, %v1133
        %vm1504 = vcmp.eq.f32.partialorder %v1286, %v1066
        %vm1505 = vcmp.eq.f32.partialorder %v1286, %v1133
        %vm1506 = vcmp.eq.f32.partialorder %v1291, %v1066
        %vm1507 = vcmp.eq.f32.partialorder %v1291, %v1133
        %vm1508 = vcmp.eq.f32.partialorder %v1296, %v1066
        %vm1509 = vcmp.eq.f32.partialorder %v1296, %v1133
        %vm1510 = vcmp.eq.f32.partialorder %v1301, %v1066
        %vm1511 = vcmp.eq.f32.partialorder %v1301, %v1133
        %vm1512 = vcmp.eq.f32.partialorder %v1306, %v1066
        %vm1513 = vcmp.eq.f32.partialorder %v1306, %v1133
        %vm1514 = vcmp.eq.f32.partialorder %v1311, %v1066
        %vm1515 = vcmp.eq.f32.partialorder %v1311, %v1133
        %vm1516 = vcmp.eq.f32.partialorder %v1316, %v1066
        %vm1517 = vcmp.eq.f32.partialorder %v1316, %v1133
        %vm1518 = vcmp.eq.f32.partialorder %v1321, %v1066
        %vm1519 = vcmp.eq.f32.partialorder %v1321, %v1133
        %vm1520 = vcmp.eq.f32.partialorder %v1326, %v1066
        %vm1521 = vcmp.eq.f32.partialorder %v1326, %v1133
        %vm1522 = vcmp.eq.f32.partialorder %v1331, %v1066
        %vm1523 = vcmp.eq.f32.partialorder %v1331, %v1133
        %vm1524 = vcmp.eq.f32.partialorder %v1336, %v1066
        %vm1525 = vcmp.eq.f32.partialorder %v1336, %v1133
        %vm1526 = vcmp.eq.f32.partialorder %v1341, %v1066
        %vm1527 = vcmp.eq.f32.partialorder %v1341, %v1133
        %vm1528 = vcmp.eq.f32.partialorder %v1346, %v1066
        %vm1529 = vcmp.eq.f32.partialorder %v1346, %v1133
        %vm1530 = vcmp.eq.f32.partialorder %v1351, %v1066
        %vm1531 = vcmp.eq.f32.partialorder %v1351, %v1133
        %vm1532 = vcmp.eq.f32.partialorder %v1356, %v1066
        %vm1533 = vcmp.eq.f32.partialorder %v1356, %v1133
        %vm1534 = vcmp.eq.f32.partialorder %v1361, %v1066
        %vm1535 = vcmp.eq.f32.partialorder %v1361, %v1133
        %vm1536 = vcmp.eq.f32.partialorder %v1366, %v1066
        %vm1537 = vcmp.eq.f32.partialorder %v1366, %v1133
        %vm1538 = vcmp.eq.f32.partialorder %v1371, %v1066
        %vm1539 = vcmp.eq.f32.partialorder %v1371, %v1133
        %vm1540 = vcmp.eq.f32.partialorder %v1376, %v1066
        %vm1541 = vcmp.eq.f32.partialorder %v1376, %v1133
        %vm1542 = vcmp.eq.f32.partialorder %v1381, %v1066
        %vm1543 = vcmp.eq.f32.partialorder %v1381, %v1133
        %vm1544 = vcmp.eq.f32.partialorder %v1386, %v1066
        %vm1545 = vcmp.eq.f32.partialorder %v1386, %v1133
        %vm1546 = vcmp.eq.f32.partialorder %v1391, %v1066
        %vm1547 = vcmp.eq.f32.partialorder %v1391, %v1133
        %vm1548 = vcmp.eq.f32.partialorder %v1396, %v1066
        %vm1549 = vcmp.eq.f32.partialorder %v1396, %v1133
        %vm1550 = vcmp.eq.f32.partialorder %v1401, %v1066
        %vm1551 = vcmp.eq.f32.partialorder %v1401, %v1133
        %vm1552 = vcmp.eq.f32.partialorder %v1406, %v1066
        %vm1553 = vcmp.eq.f32.partialorder %v1406, %v1133
        %vm1554 = vcmp.eq.f32.partialorder %v1411, %v1066
        %vm1555 = vcmp.eq.f32.partialorder %v1411, %v1133
        %vm1556 = vcmp.eq.f32.partialorder %v1416, %v1066
        %vm1557 = vcmp.eq.f32.partialorder %v1416, %v1133
        %vm1558 = vcmp.eq.f32.partialorder %v1421, %v1066
        %vm1559 = vcmp.eq.f32.partialorder %v1421, %v1133
        %vm1560 = vcmp.eq.f32.partialorder %v1426, %v1066
        %vm1561 = vcmp.eq.f32.partialorder %v1426, %v1133
        %vm1562 = vcmp.eq.f32.partialorder %v1431, %v1066
        %vm1563 = vcmp.eq.f32.partialorder %v1431, %v1133
        %vm1564 = vcmp.eq.f32.partialorder %v1436, %v1066
        %vm1565 = vcmp.eq.f32.partialorder %v1436, %v1133
        %vm1566 = vcmp.lt.s32.totalorder %v489, %v491
        %vm1567 = vcmp.lt.s32.totalorder %v489, %v492
        %vm1568 = vcmp.lt.s32.totalorder %v609, %v491
        %vm1569 = vcmp.lt.s32.totalorder %v609, %v492
        %vm1570 = vcmp.lt.s32.totalorder %v610, %v491
        %vm1571 = vcmp.lt.s32.totalorder %v610, %v492
        %vm1572 = vcmp.lt.s32.totalorder %v611, %v491
        %vm1573 = vcmp.lt.s32.totalorder %v611, %v492
        %vm1574 = vcmp.lt.s32.totalorder %v612, %v491
        %vm1575 = vcmp.lt.s32.totalorder %v612, %v492
        %vm1576 = vcmp.lt.s32.totalorder %v613, %v491
        %vm1577 = vcmp.lt.s32.totalorder %v613, %v492
        %vm1578 = vcmp.lt.s32.totalorder %v614, %v491
        %vm1579 = vcmp.lt.s32.totalorder %v614, %v492
        %vm1580 = vcmp.lt.s32.totalorder %v615, %v491
        %vm1581 = vcmp.lt.s32.totalorder %v615, %v492
        %vm1582 = vcmp.lt.s32.totalorder %v616, %v491
        %vm1583 = vcmp.lt.s32.totalorder %v616, %v492
        %vm1584 = vcmp.lt.s32.totalorder %v617, %v491
        %vm1585 = vcmp.lt.s32.totalorder %v617, %v492
        %vm1586 = vcmp.lt.s32.totalorder %v618, %v491
        %vm1587 = vcmp.lt.s32.totalorder %v618, %v492
        %vm1588 = vcmp.lt.s32.totalorder %v619, %v491
        %vm1589 = vcmp.lt.s32.totalorder %v619, %v492
        %vm1590 = vcmp.lt.s32.totalorder %v620, %v491
        %vm1591 = vcmp.lt.s32.totalorder %v620, %v492
        %vm1592 = vcmp.lt.s32.totalorder %v621, %v491
        %vm1593 = vcmp.lt.s32.totalorder %v621, %v492
        %vm1594 = vcmp.lt.s32.totalorder %v622, %v491
        %vm1595 = vcmp.lt.s32.totalorder %v622, %v492
        %vm1596 = vcmp.lt.s32.totalorder %v623, %v491
        %vm1597 = vcmp.lt.s32.totalorder %v623, %v492
        %vm1598 = vcmp.lt.s32.totalorder %v1262, %v491
        %vm1599 = vcmp.lt.s32.totalorder %v1262, %v492
        %vm1600 = vcmp.lt.s32.totalorder %v1263, %v491
        %vm1601 = vcmp.lt.s32.totalorder %v1263, %v492
        %vm1602 = vcmp.lt.s32.totalorder %v1264, %v491
        %vm1603 = vcmp.lt.s32.totalorder %v1264, %v492
        %vm1604 = vcmp.lt.s32.totalorder %v1265, %v491
        %vm1605 = vcmp.lt.s32.totalorder %v1265, %v492
        %vm1606 = vcmp.lt.s32.totalorder %v1266, %v491
        %vm1607 = vcmp.lt.s32.totalorder %v1266, %v492
        %vm1608 = vcmp.lt.s32.totalorder %v1267, %v491
        %vm1609 = vcmp.lt.s32.totalorder %v1267, %v492
        %vm1610 = vcmp.lt.s32.totalorder %v1268, %v491
        %vm1611 = vcmp.lt.s32.totalorder %v1268, %v492
        %vm1612 = vcmp.lt.s32.totalorder %v1269, %v491
        %vm1613 = vcmp.lt.s32.totalorder %v1269, %v492
        %vm1614 = vcmp.lt.s32.totalorder %v1270, %v491
        %vm1615 = vcmp.lt.s32.totalorder %v1270, %v492
        %vm1616 = vcmp.lt.s32.totalorder %v1271, %v491
        %vm1617 = vcmp.lt.s32.totalorder %v1271, %v492
        %vm1618 = vcmp.lt.s32.totalorder %v1272, %v491
        %vm1619 = vcmp.lt.s32.totalorder %v1272, %v492
        %vm1620 = vcmp.lt.s32.totalorder %v1273, %v491
        %vm1621 = vcmp.lt.s32.totalorder %v1273, %v492
        %vm1622 = vcmp.lt.s32.totalorder %v1274, %v491
        %vm1623 = vcmp.lt.s32.totalorder %v1274, %v492
        %vm1624 = vcmp.lt.s32.totalorder %v1275, %v491
        %vm1625 = vcmp.lt.s32.totalorder %v1275, %v492
        %vm1626 = vcmp.lt.s32.totalorder %v1276, %v491
        %vm1627 = vcmp.lt.s32.totalorder %v1276, %v492
        %vm1628 = vcmp.lt.s32.totalorder %v1277, %v491
        %vm1629 = vcmp.lt.s32.totalorder %v1277, %v492
        %vm1630 = vmand %vm1502, %vm1566
        %vm1631 = vmand %vm1503, %vm1567
        %vm1632 = vmand %vm1504, %vm1568
        %vm1633 = vmand %vm1505, %vm1569
        %vm1634 = vmand %vm1506, %vm1570
        %vm1635 = vmand %vm1507, %vm1571
        %vm1636 = vmand %vm1508, %vm1572
        %vm1637 = vmand %vm1509, %vm1573
        %vm1638 = vmand %vm1510, %vm1574
        %vm1639 = vmand %vm1511, %vm1575
        %vm1640 = vmand %vm1512, %vm1576
        %vm1641 = vmand %vm1513, %vm1577
        %vm1642 = vmand %vm1514, %vm1578
        %vm1643 = vmand %vm1515, %vm1579
        %vm1644 = vmand %vm1516, %vm1580
        %vm1645 = vmand %vm1517, %vm1581
        %vm1646 = vmand %vm1518, %vm1582
        %vm1647 = vmand %vm1519, %vm1583
        %vm1648 = vmand %vm1520, %vm1584
        %vm1649 = vmand %vm1521, %vm1585
        %vm1650 = vmand %vm1522, %vm1586
        %vm1651 = vmand %vm1523, %vm1587
        %vm1652 = vmand %vm1524, %vm1588
        %vm1653 = vmand %vm1525, %vm1589
        %vm1654 = vmand %vm1526, %vm1590
        %vm1655 = vmand %vm1527, %vm1591
        %vm1656 = vmand %vm1528, %vm1592
        %vm1657 = vmand %vm1529, %vm1593
        %vm1658 = vmand %vm1530, %vm1594
        %vm1659 = vmand %vm1531, %vm1595
        %vm1660 = vmand %vm1532, %vm1596
        %vm1661 = vmand %vm1533, %vm1597
        %vm1662 = vmand %vm1534, %vm1598
        %vm1663 = vmand %vm1535, %vm1599
        %vm1664 = vmand %vm1536, %vm1600
        %vm1665 = vmand %vm1537, %vm1601
        %vm1666 = vmand %vm1538, %vm1602
        %vm1667 = vmand %vm1539, %vm1603
        %vm1668 = vmand %vm1540, %vm1604
        %vm1669 = vmand %vm1541, %vm1605
        %vm1670 = vmand %vm1542, %vm1606
        %vm1671 = vmand %vm1543, %vm1607
        %vm1672 = vmand %vm1544, %vm1608
        %vm1673 = vmand %vm1545, %vm1609
        %vm1674 = vmand %vm1546, %vm1610
        %vm1675 = vmand %vm1547, %vm1611
        %vm1676 = vmand %vm1548, %vm1612
        %vm1677 = vmand %vm1549, %vm1613
        %vm1678 = vmand %vm1550, %vm1614
        %vm1679 = vmand %vm1551, %vm1615
        %vm1680 = vmand %vm1552, %vm1616
        %vm1681 = vmand %vm1553, %vm1617
        %vm1682 = vmand %vm1554, %vm1618
        %vm1683 = vmand %vm1555, %vm1619
        %vm1684 = vmand %vm1556, %vm1620
        %vm1685 = vmand %vm1557, %vm1621
        %vm1686 = vmand %vm1558, %vm1622
        %vm1687 = vmand %vm1559, %vm1623
        %vm1688 = vmand %vm1560, %vm1624
        %vm1689 = vmand %vm1561, %vm1625
        %vm1690 = vmand %vm1562, %vm1626
        %vm1691 = vmand %vm1563, %vm1627
        %vm1692 = vmand %vm1564, %vm1628
        %vm1693 = vmand %vm1565, %vm1629
        %vm1694 = vmor %vm1438, %vm1630
        %vm1695 = vmor %vm1439, %vm1631
        %vm1696 = vmor %vm1440, %vm1632
        %vm1697 = vmor %vm1441, %vm1633
        %vm1698 = vmor %vm1442, %vm1634
        %vm1699 = vmor %vm1443, %vm1635
        %vm1700 = vmor %vm1444, %vm1636
        %vm1701 = vmor %vm1445, %vm1637
        %vm1702 = vmor %vm1446, %vm1638
        %vm1703 = vmor %vm1447, %vm1639
        %vm1704 = vmor %vm1448, %vm1640
        %vm1705 = vmor %vm1449, %vm1641
        %vm1706 = vmor %vm1450, %vm1642
        %vm1707 = vmor %vm1451, %vm1643
        %vm1708 = vmor %vm1452, %vm1644
        %vm1709 = vmor %vm1453, %vm1645
        %vm1710 = vmor %vm1454, %vm1646
        %vm1711 = vmor %vm1455, %vm1647
        %vm1712 = vmor %vm1456, %vm1648
        %vm1713 = vmor %vm1457, %vm1649
        %vm1714 = vmor %vm1458, %vm1650
        %vm1715 = vmor %vm1459, %vm1651
        %vm1716 = vmor %vm1460, %vm1652
        %vm1717 = vmor %vm1461, %vm1653
        %vm1718 = vmor %vm1462, %vm1654
        %vm1719 = vmor %vm1463, %vm1655
        %vm1720 = vmor %vm1464, %vm1656
        %vm1721 = vmor %vm1465, %vm1657
        %vm1722 = vmor %vm1466, %vm1658
        %vm1723 = vmor %vm1467, %vm1659
        %vm1724 = vmor %vm1468, %vm1660
        %vm1725 = vmor %vm1469, %vm1661
        %vm1726 = vmor %vm1470, %vm1662
        %vm1727 = vmor %vm1471, %vm1663
        %vm1728 = vmor %vm1472, %vm1664
        %vm1729 = vmor %vm1473, %vm1665
        %vm1730 = vmor %vm1474, %vm1666
        %vm1731 = vmor %vm1475, %vm1667
        %vm1732 = vmor %vm1476, %vm1668
        %vm1733 = vmor %vm1477, %vm1669
        %vm1734 = vmor %vm1478, %vm1670
        %vm1735 = vmor %vm1479, %vm1671
        %vm1736 = vmor %vm1480, %vm1672
        %vm1737 = vmor %vm1481, %vm1673
        %vm1738 = vmor %vm1482, %vm1674
        %vm1739 = vmor %vm1483, %vm1675
        %vm1740 = vmor %vm1484, %vm1676
        %vm1741 = vmor %vm1485, %vm1677
        %vm1742 = vmor %vm1486, %vm1678
        %vm1743 = vmor %vm1487, %vm1679
        %vm1744 = vmor %vm1488, %vm1680
        %vm1745 = vmor %vm1489, %vm1681
        %vm1746 = vmor %vm1490, %vm1682
        %vm1747 = vmor %vm1491, %vm1683
        %vm1748 = vmor %vm1492, %vm1684
        %vm1749 = vmor %vm1493, %vm1685
        %vm1750 = vmor %vm1494, %vm1686
        %vm1751 = vmor %vm1495, %vm1687
        %vm1752 = vmor %vm1496, %vm1688
        %vm1753 = vmor %vm1497, %vm1689
        %vm1754 = vmor %vm1498, %vm1690
        %vm1755 = vmor %vm1499, %vm1691
        %vm1756 = vmor %vm1500, %vm1692
        %vm1757 = vmor %vm1501, %vm1693
        %v1758 = vsel %vm1694, 1, 0
        %v1759 = vsel %vm1695, 1, 0
        %v1760 = vsel %vm1696, 1, 0
        %v1761 = vsel %vm1697, 1, 0
        %v1762 = vsel %vm1698, 1, 0
        %v1763 = vsel %vm1699, 1, 0
        %v1764 = vsel %vm1700, 1, 0
        %v1765 = vsel %vm1701, 1, 0
        %v1766 = vsel %vm1702, 1, 0
        %v1767 = vsel %vm1703, 1, 0
        %v1768 = vsel %vm1704, 1, 0
        %v1769 = vsel %vm1705, 1, 0
        %v1770 = vsel %vm1706, 1, 0
        %v1771 = vsel %vm1707, 1, 0
        %v1772 = vsel %vm1708, 1, 0
        %v1773 = vsel %vm1709, 1, 0
        %v1774 = vsel %vm1710, 1, 0
        %v1775 = vsel %vm1711, 1, 0
        %v1776 = vsel %vm1712, 1, 0
        %v1777 = vsel %vm1713, 1, 0
        %v1778 = vsel %vm1714, 1, 0
        %v1779 = vsel %vm1715, 1, 0
        %v1780 = vsel %vm1716, 1, 0
        %v1781 = vsel %vm1717, 1, 0
        %v1782 = vsel %vm1718, 1, 0
        %v1783 = vsel %vm1719, 1, 0
        %v1784 = vsel %vm1720, 1, 0
        %v1785 = vsel %vm1721, 1, 0
        %v1786 = vsel %vm1722, 1, 0
        %v1787 = vsel %vm1723, 1, 0
        %v1788 = vsel %vm1724, 1, 0
        %v1789 = vsel %vm1725, 1, 0
        %v1790 = vsel %vm1726, 1, 0
        %v1791 = vsel %vm1727, 1, 0
        %v1792 = vsel %vm1728, 1, 0
        %v1793 = vsel %vm1729, 1, 0
        %v1794 = vsel %vm1730, 1, 0
        %v1795 = vsel %vm1731, 1, 0
        %v1796 = vsel %vm1732, 1, 0
        %v1797 = vsel %vm1733, 1, 0
        %v1798 = vsel %vm1734, 1, 0
        %v1799 = vsel %vm1735, 1, 0
        %v1800 = vsel %vm1736, 1, 0
        %v1801 = vsel %vm1737, 1, 0
        %v1802 = vsel %vm1738, 1, 0
        %v1803 = vsel %vm1739, 1, 0
        %v1804 = vsel %vm1740, 1, 0
        %v1805 = vsel %vm1741, 1, 0
        %v1806 = vsel %vm1742, 1, 0
        %v1807 = vsel %vm1743, 1, 0
        %v1808 = vsel %vm1744, 1, 0
        %v1809 = vsel %vm1745, 1, 0
        %v1810 = vsel %vm1746, 1, 0
        %v1811 = vsel %vm1747, 1, 0
        %v1812 = vsel %vm1748, 1, 0
        %v1813 = vsel %vm1749, 1, 0
        %v1814 = vsel %vm1750, 1, 0
        %v1815 = vsel %vm1751, 1, 0
        %v1816 = vsel %vm1752, 1, 0
        %v1817 = vsel %vm1753, 1, 0
        %v1818 = vsel %vm1754, 1, 0
        %v1819 = vsel %vm1755, 1, 0
        %v1820 = vsel %vm1756, 1, 0
        %v1821 = vsel %vm1757, 1, 0
        %v1822 = vcvt.s32.f32 %v1758
        %v1823 = vcvt.s32.f32 %v1759
        %v1824 = vcvt.s32.f32 %v1760
        %v1825 = vcvt.s32.f32 %v1761
        %v1826 = vcvt.s32.f32 %v1762
        %v1827 = vcvt.s32.f32 %v1763
        %v1828 = vcvt.s32.f32 %v1764
        %v1829 = vcvt.s32.f32 %v1765
        %v1830 = vcvt.s32.f32 %v1766
        %v1831 = vcvt.s32.f32 %v1767
        %v1832 = vcvt.s32.f32 %v1768
        %v1833 = vcvt.s32.f32 %v1769
        %v1834 = vcvt.s32.f32 %v1770
        %v1835 = vcvt.s32.f32 %v1771
        %v1836 = vcvt.s32.f32 %v1772
        %v1837 = vcvt.s32.f32 %v1773
        %v1838 = vcvt.s32.f32 %v1774
        %v1839 = vcvt.s32.f32 %v1775
        %v1840 = vcvt.s32.f32 %v1776
        %v1841 = vcvt.s32.f32 %v1777
        %v1842 = vcvt.s32.f32 %v1778
        %v1843 = vcvt.s32.f32 %v1779
        %v1844 = vcvt.s32.f32 %v1780
        %v1845 = vcvt.s32.f32 %v1781
        %v1846 = vcvt.s32.f32 %v1782
        %v1847 = vcvt.s32.f32 %v1783
        %v1848 = vcvt.s32.f32 %v1784
        %v1849 = vcvt.s32.f32 %v1785
        %v1850 = vcvt.s32.f32 %v1786
        %v1851 = vcvt.s32.f32 %v1787
        %v1852 = vcvt.s32.f32 %v1788
        %v1853 = vcvt.s32.f32 %v1789
        %v1854 = vcvt.s32.f32 %v1790
        %v1855 = vcvt.s32.f32 %v1791
        %v1856 = vcvt.s32.f32 %v1792
        %v1857 = vcvt.s32.f32 %v1793
        %v1858 = vcvt.s32.f32 %v1794
        %v1859 = vcvt.s32.f32 %v1795
        %v1860 = vcvt.s32.f32 %v1796
        %v1861 = vcvt.s32.f32 %v1797
        %v1862 = vcvt.s32.f32 %v1798
        %v1863 = vcvt.s32.f32 %v1799
        %v1864 = vcvt.s32.f32 %v1800
        %v1865 = vcvt.s32.f32 %v1801
        %v1866 = vcvt.s32.f32 %v1802
        %v1867 = vcvt.s32.f32 %v1803
        %v1868 = vcvt.s32.f32 %v1804
        %v1869 = vcvt.s32.f32 %v1805
        %v1870 = vcvt.s32.f32 %v1806
        %v1871 = vcvt.s32.f32 %v1807
        %v1872 = vcvt.s32.f32 %v1808
        %v1873 = vcvt.s32.f32 %v1809
        %v1874 = vcvt.s32.f32 %v1810
        %v1875 = vcvt.s32.f32 %v1811
        %v1876 = vcvt.s32.f32 %v1812
        %v1877 = vcvt.s32.f32 %v1813
        %v1878 = vcvt.s32.f32 %v1814
        %v1879 = vcvt.s32.f32 %v1815
        %v1880 = vcvt.s32.f32 %v1816
        %v1881 = vcvt.s32.f32 %v1817
        %v1882 = vcvt.s32.f32 %v1818
        %v1883 = vcvt.s32.f32 %v1819
        %v1884 = vcvt.s32.f32 %v1820
        %v1885 = vcvt.s32.f32 %v1821
        %v1886 = vadd.f32 %v1822, %v1824
        %v1887 = vadd.f32 %v1886, %v1826
        %v1888 = vadd.f32 %v1887, %v1828
        %v1889 = vadd.f32 %v1888, %v1830
        %v1890 = vadd.f32 %v1889, %v1832
        %v1891 = vadd.f32 %v1890, %v1834
        %v1892 = vadd.f32 %v1891, %v1836
        %v1893 = vadd.f32 %v1892, %v1838
        %v1894 = vadd.f32 %v1893, %v1840
        %v1895 = vadd.f32 %v1894, %v1842
        %v1896 = vadd.f32 %v1895, %v1844
        %v1897 = vadd.f32 %v1896, %v1846
        %v1898 = vadd.f32 %v1897, %v1848
        %v1899 = vadd.f32 %v1898, %v1850
        %v1900 = vadd.f32 %v1899, %v1852
        %v1901 = vadd.f32 %v1900, %v1854
        %v1902 = vadd.f32 %v1901, %v1856
        %v1903 = vadd.f32 %v1902, %v1858
        %v1904 = vadd.f32 %v1903, %v1860
        %v1905 = vadd.f32 %v1904, %v1862
        %v1906 = vadd.f32 %v1905, %v1864
        %v1907 = vadd.f32 %v1906, %v1866
        %v1908 = vadd.f32 %v1907, %v1868
        %v1909 = vadd.f32 %v1908, %v1870
        %v1910 = vadd.f32 %v1909, %v1872
        %v1911 = vadd.f32 %v1910, %v1874
        %v1912 = vadd.f32 %v1911, %v1876
        %v1913 = vadd.f32 %v1912, %v1878
        %v1914 = vadd.f32 %v1913, %v1880
        %v1915 = vadd.f32 %v1914, %v1882
        %v1916 = vadd.f32 %v1915, %v1884
        %v1917 = vrot.slane %v1916, 4
        %v1918 = vadd.f32 %v1916, %v1917
        %v1919 = vrot.slane %v1918, 2
        %v1920 = vadd.f32 %v1918, %v1919
        %v1921 = vrot.slane %v1920, 1
        %v1922 = vadd.f32 %v1920, %v1921
        %v1923 = vadd.f32 %v1823, %v1825
        %v1924 = vadd.f32 %v1923, %v1827
        %v1925 = vadd.f32 %v1924, %v1829
        %v1926 = vadd.f32 %v1925, %v1831
        %v1927 = vadd.f32 %v1926, %v1833
        %v1928 = vadd.f32 %v1927, %v1835
        %v1929 = vadd.f32 %v1928, %v1837
        %v1930 = vadd.f32 %v1929, %v1839
        %v1931 = vadd.f32 %v1930, %v1841
        %v1932 = vadd.f32 %v1931, %v1843
        %v1933 = vadd.f32 %v1932, %v1845
        %v1934 = vadd.f32 %v1933, %v1847
        %v1935 = vadd.f32 %v1934, %v1849
        %v1936 = vadd.f32 %v1935, %v1851
        %v1937 = vadd.f32 %v1936, %v1853
        %v1938 = vadd.f32 %v1937, %v1855
        %v1939 = vadd.f32 %v1938, %v1857
        %v1940 = vadd.f32 %v1939, %v1859
        %v1941 = vadd.f32 %v1940, %v1861
        %v1942 = vadd.f32 %v1941, %v1863
        %v1943 = vadd.f32 %v1942, %v1865
        %v1944 = vadd.f32 %v1943, %v1867
        %v1945 = vadd.f32 %v1944, %v1869
        %v1946 = vadd.f32 %v1945, %v1871
        %v1947 = vadd.f32 %v1946, %v1873
        %v1948 = vadd.f32 %v1947, %v1875
        %v1949 = vadd.f32 %v1948, %v1877
        %v1950 = vadd.f32 %v1949, %v1879
        %v1951 = vadd.f32 %v1950, %v1881
        %v1952 = vadd.f32 %v1951, %v1883
        %v1953 = vadd.f32 %v1952, %v1885
        %v1954 = vrot.slane %v1953, 4
        %v1955 = vadd.f32 %v1953, %v1954
        %v1956 = vrot.slane %v1955, 2
        %v1957 = vadd.f32 %v1955, %v1956
        %v1958 = vrot.slane %v1957, 1
        %v1959 = vadd.f32 %v1957, %v1958
        %v1960 = vadd.f32 %v1922, 0.0
        %v1961 = vadd.f32 %v1959, 0.0
        %v1962 = vmul.f32 %v982, 3.0
        %vm1963 = vcmp.lt.f32.partialorder %v1960, %v1962
        %vm1964 = vcmp.lt.f32.partialorder %v1961, %v1962
        %v1965 = vsel %vm1963, 1, 0
        %v1966 = vsel %vm1964, 1, 0
        %v1967 = vcvt.s32.f32 %v1965
        %v1968 = vcvt.s32.f32 %v1966
        %v1969 = vmul.f32 %v1061, %v1967
        %v1970 = vmul.f32 %v1062, %v1968
        %v1971 = vsel %vm977, %v1969, 0.0
        %v1972 = vsel %vm977, %v1970, 0.0
        %v1973 = vadd.f32 %v1971, %v1972
        %1974 = vadd.xlane.f32.xlu0 %v1973
        %v1975 = vpop.xlane.xlu0 %1974
        %v1977 = vrot.slane %v982, 4
        %v1980 = vrot.slane %v1058, 4
        %v1983 = vrot.slane %v1975, 4
        %v1985 = vsel %vm1197, %v976, %v1977
        %vm1986 = vcmask 15360
        %v1987 = vsel %vm1986, %v1985, %v1980
        %vm1988 = vcmask 23552
        %v1989 = vsel %vm1988, %v1987, %v1983
        %vm1990 = vcmask 24576
        %1991 = vst.msk [vmem:[%s313] sm:$0x1] %vm1990, %v1989
        %s1992 = sand.u32 %s156, 1
        %s1993 = scalar_lea.sflag [#allocation5], %s1992
        %s1994 = sand.u32 %s156, 1
        %s1995 = scalar_lea.vmem [#allocation9], %s1994
        // Predicated region
        $region53: #{tpu_custom_call.1} parent=39 // pred_check
          %p1996 = pneg %p166
        $region54: #{tpu_custom_call.1} parent=39 // pred_check_branch
          %1998 = sbr.rel (%p1996) target = $region56
        $region55: #{tpu_custom_call.1} parent=39 // pred_region
          %s2000 = ssub.s32 16, 16
          %2001 = vsyncadd %s1993, %s2000
          %s2002 = smul.addr %s23, 16
          %s2003 = scalar_lea.hbm %s5, %s2002
          %s2005 = sshll.u32 %s1995, 4
          %s2006 = int_to_ptr.vmem [resolvable:$true] %s2005
          %2008 = dma.vmem_to_hbm [thread:$0]  %s2006, 16, %s2003, %s1993
        $region56: #{tpu_custom_call.1} parent=39 // pred_fallthru
          _
      $region40: #{tpu_custom_call.1} parent=5 // pred_fallthru
        _
      %p2009 = scmp.le.s32.totalorder 2, %s18
      // Predicated region
      $region57: #{tpu_custom_call.1} parent=5 // pred_check
        %p2010 = pneg %p2009
      $region58: #{tpu_custom_call.1} parent=5 // pred_check_branch
        %2012 = sbr.rel (%p2010) target = $region60
      $region59: #{tpu_custom_call.1} parent=5 // pred_region
        %s2013 = ssub.s32 %s18, 2
        // Predicated region
        $region61: #{tpu_custom_call.1} parent=59 // pred_check
          %p2014 = pneg %p172
        $region62: #{tpu_custom_call.1} parent=59 // pred_check_branch
          %2016 = sbr.rel (%p2014) target = $region64
        $region63: #{tpu_custom_call.1} parent=59 // pred_region
          %s2017 = sand.u32 %s157, 1
          %s2018 = scalar_lea.sflag [#allocation5], %s2017
          %s2019 = sand.u32 %s157, 1
          %s2020 = scalar_lea.vmem [#allocation9], %s2019
          %2021 = dma.done %s2018, 16
        $region64: #{tpu_custom_call.1} parent=59 // pred_fallthru
          _
      $region60: #{tpu_custom_call.1} parent=5 // pred_fallthru
        _
    $region6: #{tpu_custom_call.1} parent=1 // loop_footer
      %s22 = sadd.s32 1, %s18
    $region7: #{tpu_custom_call.1} parent=1 // loop_footer_branch
      %17 = sbr.rel target = $region3
    $region8: #{tpu_custom_call.1} parent=1 // loop_exit
      _
    %2022 = vsyncpa [#allocation4], 1
    %s2023 = scalar_lea.sflag [#allocation4], 1
    %2024 = vsyncpa %s2023, 1
    %2025 = vsyncpa [#allocation7], 1
    %s2026 = scalar_lea.sflag [#allocation7], 1
    %2027 = vsyncpa %s2026, 1
    %2028 = vsyncpa [#allocation5], 1
    %s2029 = scalar_lea.sflag [#allocation5], 1
    %2030 = vsyncpa %s2029, 1

</llo_original>
